<compile_context>
chip_gen: v7x
topology: tpu7x:2x2x1
jax: 0.10.0
libtpu: 0.0.40
codegen_flags: <defaults>
</compile_context>

<pallas_src>
import math
import functools

import jax
import jax.numpy as jnp
from jax.experimental import pallas as pl
from jax.experimental.pallas import tpu as pltpu


def _mha_kernel(q_ref, k_ref, v_ref, wq_ref, wk_ref, wv_ref,
                bq_ref, bk_ref, bv_ref, wo_ref, bo_ref,
                *refs, num_heads_p, need_weights, mxu_dtype):
    if need_weights:
        out_ref, attw_ref, acc_ref, attw_acc_ref = refs
    else:
        (out_ref, acc_ref) = refs
        attw_ref = attw_acc_ref = None

    TB, L, E = q_ref.shape
    S = k_ref.shape[1]
    hd = wq_ref.shape[-1]
    cdt = mxu_dtype
    f32 = jnp.float32
    h = pl.program_id(1)

    @pl.when(h == 0)
    def _init():
        acc_ref[...] = jnp.zeros_like(acc_ref)
        if need_weights:
            attw_acc_ref[...] = jnp.zeros_like(attw_acc_ref)

    # Flatten the batch tile into the matmul M dimension (leading-dim merge only).
    x_q = q_ref[...].reshape(TB * L, E).astype(cdt)
    x_k = k_ref[...].reshape(TB * S, E).astype(cdt)
    x_v = v_ref[...].reshape(TB * S, E).astype(cdt)

    # Per-head projections: native-dtype MXU operands, f32 accumulate, f32 bias add.
    # 1/sqrt(hd) is pre-folded into wq/bq on the host.
    q = (jnp.dot(x_q, wq_ref[...], preferred_element_type=f32)
         + bq_ref[...].astype(f32)).astype(cdt).reshape(TB, L, hd)
    k = (jnp.dot(x_k, wk_ref[...], preferred_element_type=f32)
         + bk_ref[...].astype(f32)).astype(cdt).reshape(TB, S, hd)
    v = (jnp.dot(x_v, wv_ref[...], preferred_element_type=f32)
         + bv_ref[...].astype(f32)).astype(cdt).reshape(TB, S, hd)

    # Batched (over the batch tile) attention scores and softmax (f32).
    scores = jnp.einsum('bld,bsd->bls', q, k, preferred_element_type=f32)   # (TB, L, S)
    m = jnp.max(scores, axis=-1, keepdims=True)
    p = jnp.exp(scores - m)
    denom = jnp.sum(p, axis=-1, keepdims=True)                              # (TB, L, 1), >= 1
    # Narrow EUP reciprocal + two Newton steps (near-exact) + one wide multiply.
    r = pl.reciprocal(denom, approx=True)
    r = r * (2.0 - denom * r)
    r = r * (2.0 - denom * r)
    p = p * r

    if need_weights:
        attw_acc_ref[...] += p

    # Context and output-projection accumulation for this head.
    ctx = jnp.einsum('bls,bsd->bld', p.astype(cdt), v,
                     preferred_element_type=f32).astype(cdt)                # (TB, L, hd)
    acc_ref[...] += jnp.dot(ctx.reshape(TB * L, hd), wo_ref[...],
                            preferred_element_type=f32)                     # (TB*L, E)

    @pl.when(h == num_heads_p - 1)
    def _finalize():
        out = acc_ref[...] + bo_ref[...].astype(f32)
        out_ref[...] = out.reshape(TB, L, E).astype(out_ref.dtype)
        if need_weights:
            attw_ref[...] = (attw_acc_ref[...] * (1.0 / num_heads_p)).astype(attw_ref.dtype)


def sub_parallel_mha_forward(query, key, value, in_proj_weight, in_proj_bias,
                             out_proj_weight, out_proj_bias, num_heads_p,
                             *, need_weights=True, mxu_dtype=None, batch_tile=None,
                             vmem_budget_bytes=32 * 1024 * 1024):
    """query: (L, N, E), key/value: (S, N, E)   (seq-first, batch_first=False).
    Returns (attn_output (L, N, E), attn_weights (N, L, S) or None)."""
    L, N, E = query.shape
    S = key.shape[0]
    H = num_heads_p
    e_p = in_proj_weight.shape[0] // 3
    hd = e_p // H
    assert hd * H == e_p, "embed_dim_per_partition must divide by heads per partition"
    scale = 1.0 / math.sqrt(hd)
    cdt = jnp.dtype(query.dtype) if mxu_dtype is None else jnp.dtype(mxu_dtype)
    attw_dtype = jnp.dtype(query.dtype)

    # ---- host-side weight plumbing (free vs. the kernel) ----
    # Head-major split, pre-transpose to (E, hd)/(hd, E), fold 1/sqrt(hd) into Wq/bq.
    wq_h = (in_proj_weight[0:e_p].reshape(H, hd, E) * scale).transpose(0, 2, 1).astype(cdt)
    wk_h = in_proj_weight[e_p:2 * e_p].reshape(H, hd, E).transpose(0, 2, 1).astype(cdt)
    wv_h = in_proj_weight[2 * e_p:3 * e_p].reshape(H, hd, E).transpose(0, 2, 1).astype(cdt)
    bq_h = (in_proj_bias[0:e_p] * scale).reshape(H, 1, hd).astype(jnp.float32)
    bk_h = in_proj_bias[e_p:2 * e_p].reshape(H, 1, hd).astype(jnp.float32)
    bv_h = in_proj_bias[2 * e_p:3 * e_p].reshape(H, 1, hd).astype(jnp.float32)
    wo_h = out_proj_weight.T.reshape(H, hd, E).astype(cdt)                  # (H, hd, E)
    bo = out_proj_bias.reshape(1, E).astype(jnp.float32)

    # Batch-major activation slabs: keeps all kernel reshapes pure leading-dim merges and
    # the per-batch attention a supported leading-batch-dim einsum.
    qb = jnp.transpose(query, (1, 0, 2))   # (N, L, E)
    kb = jnp.transpose(key, (1, 0, 2))     # (N, S, E)
    vb = jnp.transpose(value, (1, 0, 2))   # (N, S, E)

    in_bytes = jnp.dtype(query.dtype).itemsize
    c_bytes = cdt.itemsize
    attw_bytes = attw_dtype.itemsize if need_weights else 0

    def _vmem_estimate(tb):
        inp = 2 * tb * (L + 2 * S) * E * in_bytes                    # double-buffered inputs
        out = 2 * tb * L * (E * in_bytes + S * attw_bytes)           # double-buffered outputs
        wgt = 2 * (3 * E * hd + hd * E + 3 * hd + E) * max(c_bytes, 4)
        scr = tb * L * E * 4 + (tb * L * S * 4 if need_weights else 0)
        tmp = (tb * (L + 2 * S) * E * c_bytes                        # cast copies of x
               + tb * (L + 2 * S) * hd * (4 + c_bytes)               # q/k/v f32 + cdt
               + 3 * tb * L * S * 4                                  # scores / exp / p
               + tb * L * hd * (4 + c_bytes)                         # ctx
               + tb * L * E * 4)                                     # out-proj partial
        return inp + out + wgt + scr + tmp

    if batch_tile is None:
        # Cap at N//2 so the "parallel" batch axis has >=2 steps (v7x has 2 TensorCores);
        # pick the largest divisor of N whose VMEM estimate fits the budget.
        max_tb = N if N == 1 else N // 2
        divisors = [t for t in range(max_tb, 0, -1) if N % t == 0]
        batch_tile = next((t for t in divisors if _vmem_estimate(t) <= vmem_budget_bytes), 1)
    TB = int(batch_tile)
    assert N % TB == 0

    vmem_limit = 48 * 1024 * 1024                # > 16/32 MiB scoped defaults, < v7x 64 MiB
    if _vmem_estimate(TB) > vmem_limit:
        # Extreme shapes (huge L*S even at TB=1, or user-forced TB): give the compiler more
        # headroom.  TODO(synk): add a flash-style L-tile instead of growing VMEM.
        vmem_limit = min(int(1.25 * _vmem_estimate(TB)), 112 * 1024 * 1024)

    flops = (2 * N * (L + 2 * S) * E * e_p       # q/k/v projections
             + 4 * N * H * L * S * hd            # qk^T + pv
             + 2 * N * L * e_p * E)              # output projection
    transcendentals = N * H * L * S
    bytes_accessed = (N * (L + 2 * S) * E * in_bytes
                      + (4 * E * e_p + 3 * e_p + E) * c_bytes
                      + N * L * E * in_bytes
                      + N * L * S * attw_bytes)

    kernel = functools.partial(_mha_kernel, num_heads_p=H,
                               need_weights=need_weights, mxu_dtype=cdt)

    out_shapes = [jax.ShapeDtypeStruct((N, L, E), query.dtype)]
    out_specs = [pl.BlockSpec((TB, L, E), lambda i, h: (i, 0, 0))]
    scratch = [pltpu.VMEM((TB * L, E), jnp.float32)]
    if need_weights:
        out_shapes.append(jax.ShapeDtypeStruct((N, L, S), attw_dtype))
        out_specs.append(pl.BlockSpec((TB, L, S), lambda i, h: (i, 0, 0)))
        scratch.append(pltpu.VMEM((TB, L, S), jnp.float32))

    results = pl.pallas_call(
        kernel,
        out_shape=tuple(out_shapes),
        grid_spec=pltpu.PrefetchScalarGridSpec(
            num_scalar_prefetch=0,
            grid=(N // TB, H),
            in_specs=[
                pl.BlockSpec((TB, L, E), lambda i, h: (i, 0, 0)),      # query tile (fetched once per i)
                pl.BlockSpec((TB, S, E), lambda i, h: (i, 0, 0)),      # key tile
                pl.BlockSpec((TB, S, E), lambda i, h: (i, 0, 0)),      # value tile
                pl.BlockSpec((None, E, hd), lambda i, h: (h, 0, 0)),   # Wq head slice
                pl.BlockSpec((None, E, hd), lambda i, h: (h, 0, 0)),   # Wk head slice
                pl.BlockSpec((None, E, hd), lambda i, h: (h, 0, 0)),   # Wv head slice
                pl.BlockSpec((None, 1, hd), lambda i, h: (h, 0, 0)),   # bq head slice
                pl.BlockSpec((None, 1, hd), lambda i, h: (h, 0, 0)),   # bk head slice
                pl.BlockSpec((None, 1, hd), lambda i, h: (h, 0, 0)),   # bv head slice
                pl.BlockSpec((None, hd, E), lambda i, h: (h, 0, 0)),   # Wo head slice
                pl.BlockSpec((1, E), lambda i, h: (0, 0)),             # out-proj bias
            ],
            out_specs=out_specs,
            scratch_shapes=scratch,
        ),
        compiler_params=pltpu.CompilerParams(
            dimension_semantics=("parallel", "arbitrary"),
            vmem_limit_bytes=vmem_limit),
        cost_estimate=pl.CostEstimate(flops=flops,
                                      transcendentals=transcendentals,
                                      bytes_accessed=bytes_accessed),
    )(qb, kb, vb, wq_h, wk_h, wv_h, bq_h, bk_h, bv_h, wo_h, bo)

    out_b = results[0]
    attw = results[1] if need_weights else None
    attn_output = jnp.transpose(out_b, (1, 0, 2))   # back to (L, N, E)
    return attn_output, attw


def _reference_forward(query, key, value, in_proj_weight, in_proj_bias,
                       out_proj_weight, out_proj_bias, num_heads_p):
    # Pure-JAX mirror of torch.nn.functional.multi_head_attention_forward for the
    # per-rank sharded weights (forward defaults, average_attn_weights=True).
    L, N, E = query.shape
    S = key.shape[0]
    e_p = in_proj_weight.shape[0] // 3
    hd = e_p // num_heads_p
    wq, wk, wv = in_proj_weight[:e_p], in_proj_weight[e_p:2 * e_p], in_proj_weight[2 * e_p:]
    bq, bk, bv = in_proj_bias[:e_p], in_proj_bias[e_p:2 * e_p], in_proj_bias[2 * e_p:]
    q = jnp.einsum('lne,pe->lnp', query, wq) + bq
    k = jnp.einsum('sne,pe->snp', key, wk) + bk
    v = jnp.einsum('sne,pe->snp', value, wv) + bv
    q = q.reshape(L, N, num_heads_p, hd).transpose(1, 2, 0, 3)   # (N, H, L, hd)
    k = k.reshape(S, N, num_heads_p, hd).transpose(1, 2, 0, 3)
    v = v.reshape(S, N, num_heads_p, hd).transpose(1, 2, 0, 3)
    scores = jnp.einsum('nhld,nhsd->nhls', q, k) / math.sqrt(hd)
    attw = jax.nn.softmax(scores, axis=-1)                       # (N, H, L, S)
    ctx = jnp.einsum('nhls,nhsd->nhld', attw, v)                 # (N, H, L, hd)
    ctx = ctx.transpose(2, 0, 1, 3).reshape(L, N, e_p)
    out = jnp.einsum('lnp,ep->lne', ctx, out_proj_weight) + out_proj_bias
    return out, attw.mean(axis=1)


if __name__ == "__main__":
    # Module config: embed_dim=32, num_heads=4, world_size=2, rank=0.
    embed_dim = 32
    num_heads = 4
    world_size = 2
    num_heads_p = num_heads // world_size         # 2 heads on this rank
    e_p = embed_dim // world_size                 # 16 features on this rank
    L = S = 8
    N = 2

    key0 = jax.random.PRNGKey(0)
    ks = jax.random.split(key0, 8)
    query = jax.random.normal(ks[0], (L, N, embed_dim), dtype=jnp.float32)
    key_t = jax.random.normal(ks[1], (S, N, embed_dim), dtype=jnp.float32)
    value = jax.random.normal(ks[2], (S, N, embed_dim), dtype=jnp.float32)

    # Deterministic synthetic per-rank parameters (shapes per the module's __init__).
    in_proj_weight = 0.1 * jax.random.normal(ks[3], (3 * e_p, embed_dim), dtype=jnp.float32)
    in_proj_bias = 0.1 * jax.random.normal(ks[4], (3 * e_p,), dtype=jnp.float32)
    out_proj_weight = 0.1 * jax.random.normal(ks[5], (embed_dim, e_p), dtype=jnp.float32)
    out_proj_bias = 0.1 * jax.random.normal(ks[6], (embed_dim,), dtype=jnp.float32)

    ref_out, ref_w = _reference_forward(
        query, key_t, value, in_proj_weight, in_proj_bias,
        out_proj_weight, out_proj_bias, num_heads_p)

    # 1) default (native-dtype MXU operands, exact path)
    attn_out, attn_w = sub_parallel_mha_forward(
        query, key_t, value, in_proj_weight, in_proj_bias,
        out_proj_weight, out_proj_bias, num_heads_p)
    jax.block_until_ready((attn_out, attn_w))
    assert attn_out.shape == (L, N, embed_dim)
    assert attn_w.shape == (N, L, S)
    assert jnp.allclose(attn_out, ref_out, atol=1e-3, rtol=1e-3)
    assert jnp.allclose(attn_w, ref_w, atol=1e-3, rtol=1e-3)

    # 2) fast-MXU path: bf16 operands with f32 accumulation (looser tolerance).
    attn_out_bf, attn_w_bf = sub_parallel_mha_forward(
        query, key_t, value, in_proj_weight, in_proj_bias,
        out_proj_weight, out_proj_bias, num_heads_p, mxu_dtype=jnp.bfloat16)
    jax.block_until_ready((attn_out_bf, attn_w_bf))
    assert jnp.allclose(attn_out_bf, ref_out, atol=3e-2, rtol=3e-2)
    assert jnp.allclose(attn_w_bf, ref_w, atol=3e-2, rtol=3e-2)

    # 3) need_weights=False path (drops the (N, L, S) writeback entirely).
    attn_out_nw, attn_w_nw = sub_parallel_mha_forward(
        query, key_t, value, in_proj_weight, in_proj_bias,
        out_proj_weight, out_proj_bias, num_heads_p, need_weights=False)
    jax.block_until_ready(attn_out_nw)
    assert attn_w_nw is None
    assert jnp.allclose(attn_out_nw, ref_out, atol=1e-3, rtol=1e-3)

    print("KERNEL_OK")
</pallas_src>

<mosaic_0001>
module attributes {stable_mosaic.version = 11 : i64} {
  func.func @_mha_kernel(%arg0: i32, %arg1: i32, %arg2: memref<1x8x32xf32, #tpu.memory_space<vmem>>, %arg3: memref<1x8x32xf32, #tpu.memory_space<vmem>>, %arg4: memref<1x8x32xf32, #tpu.memory_space<vmem>>, %arg5: memref<1x32x8xf32, #tpu.memory_space<vmem>>, %arg6: memref<1x32x8xf32, #tpu.memory_space<vmem>>, %arg7: memref<1x32x8xf32, #tpu.memory_space<vmem>>, %arg8: memref<1x1x8xf32, #tpu.memory_space<vmem>>, %arg9: memref<1x1x8xf32, #tpu.memory_space<vmem>>, %arg10: memref<1x1x8xf32, #tpu.memory_space<vmem>>, %arg11: memref<1x8x32xf32, #tpu.memory_space<vmem>>, %arg12: memref<1x32xf32, #tpu.memory_space<vmem>>, %arg13: memref<1x8x32xf32, #tpu.memory_space<vmem>>, %arg14: memref<1x8x8xf32, #tpu.memory_space<vmem>>, %arg15: memref<8x32xf32, #tpu.memory_space<vmem>>, %arg16: memref<1x8x8xf32, #tpu.memory_space<vmem>>) attributes {dimension_semantics = [#tpu.dimension_semantics<parallel>, #tpu.dimension_semantics<arbitrary>], iteration_bounds = array<i64: 2, 2>, scalar_prefetch = 0 : i64, scratch_operands = 2 : i64, tpu.core_type = #tpu.core_type<tc>, window_params = [{transform_indices = @transform_0, window_bounds = array<i64: 1, 8, 32>}, {transform_indices = @transform_1, window_bounds = array<i64: 1, 8, 32>}, {transform_indices = @transform_2, window_bounds = array<i64: 1, 8, 32>}, {transform_indices = @transform_3, window_bounds = array<i64: 1, 32, 8>}, {transform_indices = @transform_4, window_bounds = array<i64: 1, 32, 8>}, {transform_indices = @transform_5, window_bounds = array<i64: 1, 32, 8>}, {transform_indices = @transform_6, window_bounds = array<i64: 1, 1, 8>}, {transform_indices = @transform_7, window_bounds = array<i64: 1, 1, 8>}, {transform_indices = @transform_8, window_bounds = array<i64: 1, 1, 8>}, {transform_indices = @transform_9, window_bounds = array<i64: 1, 8, 32>}, {pipeline_mode = #tpu.pipeline_mode<synchronous>, transform_indices = @transform_10, window_bounds = array<i64: 1, 32>}, {transform_indices = @transform_11, window_bounds = array<i64: 1, 8, 32>}, {transform_indices = @transform_12, window_bounds = array<i64: 1, 8, 8>}]} {
    %c0_i32 = arith.constant 0 : i32
    %0 = arith.cmpi eq, %arg1, %c0_i32 : i32
    %1 = arith.extui %0 : i1 to i32
    %c0_i32_0 = arith.constant 0 : i32
    %2 = arith.cmpi ne, %1, %c0_i32_0 : i32
    scf.if %2 {
      %cst_50 = arith.constant 0.000000e+00 : f32
      %66 = vector.broadcast %cst_50 : f32 to vector<8x32xf32>
      %c0_51 = arith.constant 0 : index
      %c0_52 = arith.constant 0 : index
      %67 = vector.load %arg15[%c0_51, %c0_52] : memref<8x32xf32, #tpu.memory_space<vmem>>, vector<8x32xf32>
      tpu.vector_store %arg15[%c0_51, %c0_52], %66 {strides = array<i32>} : memref<8x32xf32, #tpu.memory_space<vmem>>, vector<8x32xf32>,
      %cst_53 = arith.constant 0.000000e+00 : f32
      %68 = vector.broadcast %cst_53 : f32 to vector<1x8x8xf32>
      %c0_54 = arith.constant 0 : index
      %c0_55 = arith.constant 0 : index
      %c0_56 = arith.constant 0 : index
      %69 = vector.load %arg16[%c0_54, %c0_55, %c0_56] : memref<1x8x8xf32, #tpu.memory_space<vmem>>, vector<1x8x8xf32>
      tpu.vector_store %arg16[%c0_54, %c0_55, %c0_56], %68 {strides = array<i32>} : memref<1x8x8xf32, #tpu.memory_space<vmem>>, vector<1x8x8xf32>,
    } else {
    }
    %c0 = arith.constant 0 : index
    %c0_1 = arith.constant 0 : index
    %c0_2 = arith.constant 0 : index
    %3 = vector.load %arg2[%c0, %c0_1, %c0_2] : memref<1x8x32xf32, #tpu.memory_space<vmem>>, vector<1x8x32xf32>
    %4 = vector.shape_cast %3 : vector<1x8x32xf32> to vector<8x32xf32>
    %c0_3 = arith.constant 0 : index
    %c0_4 = arith.constant 0 : index
    %c0_5 = arith.constant 0 : index
    %5 = vector.load %arg3[%c0_3, %c0_4, %c0_5] : memref<1x8x32xf32, #tpu.memory_space<vmem>>, vector<1x8x32xf32>
    %6 = vector.shape_cast %5 : vector<1x8x32xf32> to vector<8x32xf32>
    %c0_6 = arith.constant 0 : index
    %c0_7 = arith.constant 0 : index
    %c0_8 = arith.constant 0 : index
    %7 = vector.load %arg4[%c0_6, %c0_7, %c0_8] : memref<1x8x32xf32, #tpu.memory_space<vmem>>, vector<1x8x32xf32>
    %8 = vector.shape_cast %7 : vector<1x8x32xf32> to vector<8x32xf32>
    %c0_9 = arith.constant 0 : index
    %c0_10 = arith.constant 0 : index
    %c0_11 = arith.constant 0 : index
    %9 = vector.load %arg5[%c0_9, %c0_10, %c0_11] : memref<1x32x8xf32, #tpu.memory_space<vmem>>, vector<1x32x8xf32>
    %10 = vector.shape_cast %9 : vector<1x32x8xf32> to vector<32x8xf32>
    %cst = arith.constant dense<0.000000e+00> : vector<8x8xf32>
    %11 = tpu.matmul %4, %10, %cst {dimension_numbers = #tpu.dot_dimension_numbers<[1], [0], [0], [1], [0, 0, 1, 1], [], []>} : vector<8x32xf32>, vector<32x8xf32>, vector<8x8xf32> -> vector<8x8xf32>
    %c0_12 = arith.constant 0 : index
    %c0_13 = arith.constant 0 : index
    %c0_14 = arith.constant 0 : index
    %12 = vector.load %arg8[%c0_12, %c0_13, %c0_14] : memref<1x1x8xf32, #tpu.memory_space<vmem>>, vector<1x1x8xf32>
    %13 = vector.shape_cast %12 : vector<1x1x8xf32> to vector<1x8xf32>
    %14 = vector.broadcast %13 : vector<1x8xf32> to vector<8x8xf32>
    %15 = arith.addf %11, %14 : vector<8x8xf32>
    %16 = vector.shape_cast %15 : vector<8x8xf32> to vector<1x8x8xf32>
    %c0_15 = arith.constant 0 : index
    %c0_16 = arith.constant 0 : index
    %c0_17 = arith.constant 0 : index
    %17 = vector.load %arg6[%c0_15, %c0_16, %c0_17] : memref<1x32x8xf32, #tpu.memory_space<vmem>>, vector<1x32x8xf32>
    %18 = vector.shape_cast %17 : vector<1x32x8xf32> to vector<32x8xf32>
    %cst_18 = arith.constant dense<0.000000e+00> : vector<8x8xf32>
    %19 = tpu.matmul %6, %18, %cst_18 {dimension_numbers = #tpu.dot_dimension_numbers<[1], [0], [0], [1], [0, 0, 1, 1], [], []>} : vector<8x32xf32>, vector<32x8xf32>, vector<8x8xf32> -> vector<8x8xf32>
    %c0_19 = arith.constant 0 : index
    %c0_20 = arith.constant 0 : index
    %c0_21 = arith.constant 0 : index
    %20 = vector.load %arg9[%c0_19, %c0_20, %c0_21] : memref<1x1x8xf32, #tpu.memory_space<vmem>>, vector<1x1x8xf32>
    %21 = vector.shape_cast %20 : vector<1x1x8xf32> to vector<1x8xf32>
    %22 = vector.broadcast %21 : vector<1x8xf32> to vector<8x8xf32>
    %23 = arith.addf %19, %22 : vector<8x8xf32>
    %24 = vector.shape_cast %23 : vector<8x8xf32> to vector<1x8x8xf32>
    %c0_22 = arith.constant 0 : index
    %c0_23 = arith.constant 0 : index
    %c0_24 = arith.constant 0 : index
    %25 = vector.load %arg7[%c0_22, %c0_23, %c0_24] : memref<1x32x8xf32, #tpu.memory_space<vmem>>, vector<1x32x8xf32>
    %26 = vector.shape_cast %25 : vector<1x32x8xf32> to vector<32x8xf32>
    %cst_25 = arith.constant dense<0.000000e+00> : vector<8x8xf32>
    %27 = tpu.matmul %8, %26, %cst_25 {dimension_numbers = #tpu.dot_dimension_numbers<[1], [0], [0], [1], [0, 0, 1, 1], [], []>} : vector<8x32xf32>, vector<32x8xf32>, vector<8x8xf32> -> vector<8x8xf32>
    %c0_26 = arith.constant 0 : index
    %c0_27 = arith.constant 0 : index
    %c0_28 = arith.constant 0 : index
    %28 = vector.load %arg10[%c0_26, %c0_27, %c0_28] : memref<1x1x8xf32, #tpu.memory_space<vmem>>, vector<1x1x8xf32>
    %29 = vector.shape_cast %28 : vector<1x1x8xf32> to vector<1x8xf32>
    %30 = vector.broadcast %29 : vector<1x8xf32> to vector<8x8xf32>
    %31 = arith.addf %27, %30 : vector<8x8xf32>
    %32 = vector.shape_cast %31 : vector<8x8xf32> to vector<1x8x8xf32>
    "tpu.trace_start"() <{level = 10 : i32, message = "bld,bsd->bls"}> : () -> ()
    %cst_29 = arith.constant dense<0.000000e+00> : vector<1x8x8xf32>
    %33 = tpu.matmul %16, %24, %cst_29 {dimension_numbers = #tpu.dot_dimension_numbers<[2], [2], [1], [1], [0, 0, 0, 1, 1, 1], [0], [0]>} : vector<1x8x8xf32>, vector<1x8x8xf32>, vector<1x8x8xf32> -> vector<1x8x8xf32>
    "tpu.trace_stop"() : () -> ()
    %cst_30 = arith.constant dense<0xFF800000> : vector<1x8xf32>
    %34 = vector.multi_reduction <maximumf>, %33, %cst_30 [2] : vector<1x8x8xf32> to vector<1x8xf32>
    %35 = vector.shape_cast %34 : vector<1x8xf32> to vector<1x8x1xf32>
    %36 = vector.broadcast %35 : vector<1x8x1xf32> to vector<1x8x8xf32>
    %37 = arith.subf %33, %36 : vector<1x8x8xf32>
    %38 = math.exp %37 : vector<1x8x8xf32>
    %cst_31 = arith.constant dense<0.000000e+00> : vector<1x8xf32>
    %39 = vector.multi_reduction <add>, %38, %cst_31 [2] : vector<1x8x8xf32> to vector<1x8xf32>
    %40 = vector.shape_cast %39 : vector<1x8xf32> to vector<1x8x1xf32>
    %41 = tpu.reciprocal %40 {approx = true} : vector<1x8x1xf32> -> vector<1x8x1xf32>
    %42 = arith.mulf %40, %41 : vector<1x8x1xf32>
    %cst_32 = arith.constant 2.000000e+00 : f32
    %43 = vector.broadcast %cst_32 : f32 to vector<1x8x1xf32>
    %44 = arith.subf %43, %42 : vector<1x8x1xf32>
    %45 = arith.mulf %41, %44 : vector<1x8x1xf32>
    %46 = arith.mulf %40, %45 : vector<1x8x1xf32>
    %cst_33 = arith.constant 2.000000e+00 : f32
    %47 = vector.broadcast %cst_33 : f32 to vector<1x8x1xf32>
    %48 = arith.subf %47, %46 : vector<1x8x1xf32>
    %49 = arith.mulf %45, %48 : vector<1x8x1xf32>
    %50 = vector.broadcast %49 : vector<1x8x1xf32> to vector<1x8x8xf32>
    %51 = arith.mulf %38, %50 : vector<1x8x8xf32>
    %c0_34 = arith.constant 0 : index
    %c0_35 = arith.constant 0 : index
    %c0_36 = arith.constant 0 : index
    %52 = vector.load %arg16[%c0_34, %c0_35, %c0_36] : memref<1x8x8xf32, #tpu.memory_space<vmem>>, vector<1x8x8xf32>
    %53 = arith.addf %52, %51 : vector<1x8x8xf32>
    %c0_37 = arith.constant 0 : index
    %c0_38 = arith.constant 0 : index
    %c0_39 = arith.constant 0 : index
    %54 = vector.load %arg16[%c0_37, %c0_38, %c0_39] : memref<1x8x8xf32, #tpu.memory_space<vmem>>, vector<1x8x8xf32>
    tpu.vector_store %arg16[%c0_37, %c0_38, %c0_39], %53 {strides = array<i32>} : memref<1x8x8xf32, #tpu.memory_space<vmem>>, vector<1x8x8xf32>,
    "tpu.trace_start"() <{level = 10 : i32, message = "bls,bsd->bld"}> : () -> ()
    %cst_40 = arith.constant dense<0.000000e+00> : vector<1x8x8xf32>
    %55 = tpu.matmul %51, %32, %cst_40 {dimension_numbers = #tpu.dot_dimension_numbers<[2], [1], [1], [2], [0, 0, 0, 1, 1, 2], [0], [0]>} : vector<1x8x8xf32>, vector<1x8x8xf32>, vector<1x8x8xf32> -> vector<1x8x8xf32>
    "tpu.trace_stop"() : () -> ()
    %c0_41 = arith.constant 0 : index
    %c0_42 = arith.constant 0 : index
    %56 = vector.load %arg15[%c0_41, %c0_42] : memref<8x32xf32, #tpu.memory_space<vmem>>, vector<8x32xf32>
    %57 = vector.shape_cast %55 : vector<1x8x8xf32> to vector<8x8xf32>
    %c0_43 = arith.constant 0 : index
    %c0_44 = arith.constant 0 : index
    %c0_45 = arith.constant 0 : index
    %58 = vector.load %arg11[%c0_43, %c0_44, %c0_45] : memref<1x8x32xf32, #tpu.memory_space<vmem>>, vector<1x8x32xf32>
    %59 = vector.shape_cast %58 : vector<1x8x32xf32> to vector<8x32xf32>
    %cst_46 = arith.constant dense<0.000000e+00> : vector<8x32xf32>
    %60 = tpu.matmul %57, %59, %cst_46 {dimension_numbers = #tpu.dot_dimension_numbers<[1], [0], [0], [1], [0, 0, 1, 1], [], []>} : vector<8x8xf32>, vector<8x32xf32>, vector<8x32xf32> -> vector<8x32xf32>
    %61 = arith.addf %56, %60 : vector<8x32xf32>
    %c0_47 = arith.constant 0 : index
    %c0_48 = arith.constant 0 : index
    %62 = vector.load %arg15[%c0_47, %c0_48] : memref<8x32xf32, #tpu.memory_space<vmem>>, vector<8x32xf32>
    tpu.vector_store %arg15[%c0_47, %c0_48], %61 {strides = array<i32>} : memref<8x32xf32, #tpu.memory_space<vmem>>, vector<8x32xf32>,
    %c1_i32 = arith.constant 1 : i32
    %63 = arith.cmpi eq, %arg1, %c1_i32 : i32
    %64 = arith.extui %63 : i1 to i32
    %c0_i32_49 = arith.constant 0 : i32
    %65 = arith.cmpi ne, %64, %c0_i32_49 : i32
    scf.if %65 {
      %c0_50 = arith.constant 0 : index
      %c0_51 = arith.constant 0 : index
      %66 = vector.load %arg15[%c0_50, %c0_51] : memref<8x32xf32, #tpu.memory_space<vmem>>, vector<8x32xf32>
      %c0_52 = arith.constant 0 : index
      %c0_53 = arith.constant 0 : index
      %67 = vector.load %arg12[%c0_52, %c0_53] : memref<1x32xf32, #tpu.memory_space<vmem>>, vector<1x32xf32>
      %68 = vector.broadcast %67 : vector<1x32xf32> to vector<8x32xf32>
      %69 = arith.addf %66, %68 : vector<8x32xf32>
      %70 = vector.shape_cast %69 : vector<8x32xf32> to vector<1x8x32xf32>
      %c0_54 = arith.constant 0 : index
      %c0_55 = arith.constant 0 : index
      %c0_56 = arith.constant 0 : index
      %71 = vector.load %arg13[%c0_54, %c0_55, %c0_56] : memref<1x8x32xf32, #tpu.memory_space<vmem>>, vector<1x8x32xf32>
      tpu.vector_store %arg13[%c0_54, %c0_55, %c0_56], %70 {strides = array<i32>} : memref<1x8x32xf32, #tpu.memory_space<vmem>>, vector<1x8x32xf32>,
      %c0_57 = arith.constant 0 : index
      %c0_58 = arith.constant 0 : index
      %c0_59 = arith.constant 0 : index
      %72 = vector.load %arg16[%c0_57, %c0_58, %c0_59] : memref<1x8x8xf32, #tpu.memory_space<vmem>>, vector<1x8x8xf32>
      %cst_60 = arith.constant 5.000000e-01 : f32
      %73 = vector.broadcast %cst_60 : f32 to vector<1x8x8xf32>
      %74 = arith.mulf %72, %73 : vector<1x8x8xf32>
      %c0_61 = arith.constant 0 : index
      %c0_62 = arith.constant 0 : index
      %c0_63 = arith.constant 0 : index
      %75 = vector.load %arg14[%c0_61, %c0_62, %c0_63] : memref<1x8x8xf32, #tpu.memory_space<vmem>>, vector<1x8x8xf32>
      tpu.vector_store %arg14[%c0_61, %c0_62, %c0_63], %74 {strides = array<i32>} : memref<1x8x8xf32, #tpu.memory_space<vmem>>, vector<1x8x8xf32>,
    } else {
    }
    return
  }
  func.func @transform_0(%arg0: i32, %arg1: i32) -> (i32, i32, i32) {
    %c0_i32 = arith.constant 0 : i32
    %c0_i32_0 = arith.constant 0 : i32
    %c0_i32_1 = arith.constant 0 : i32
    return %arg0, %c0_i32, %c0_i32_0 : i32, i32, i32
  }
  func.func @transform_1(%arg0: i32, %arg1: i32) -> (i32, i32, i32) {
    %c0_i32 = arith.constant 0 : i32
    %c0_i32_0 = arith.constant 0 : i32
    %c0_i32_1 = arith.constant 0 : i32
    return %arg0, %c0_i32, %c0_i32_0 : i32, i32, i32
  }
  func.func @transform_2(%arg0: i32, %arg1: i32) -> (i32, i32, i32) {
    %c0_i32 = arith.constant 0 : i32
    %c0_i32_0 = arith.constant 0 : i32
    %c0_i32_1 = arith.constant 0 : i32
    return %arg0, %c0_i32, %c0_i32_0 : i32, i32, i32
  }
  func.func @transform_3(%arg0: i32, %arg1: i32) -> (i32, i32, i32) {
    %c0_i32 = arith.constant 0 : i32
    %c0_i32_0 = arith.constant 0 : i32
    %c0_i32_1 = arith.constant 0 : i32
    return %arg1, %c0_i32, %c0_i32_0 : i32, i32, i32
  }
  func.func @transform_4(%arg0: i32, %arg1: i32) -> (i32, i32, i32) {
    %c0_i32 = arith.constant 0 : i32
    %c0_i32_0 = arith.constant 0 : i32
    %c0_i32_1 = arith.constant 0 : i32
    return %arg1, %c0_i32, %c0_i32_0 : i32, i32, i32
  }
  func.func @transform_5(%arg0: i32, %arg1: i32) -> (i32, i32, i32) {
    %c0_i32 = arith.constant 0 : i32
    %c0_i32_0 = arith.constant 0 : i32
    %c0_i32_1 = arith.constant 0 : i32
    return %arg1, %c0_i32, %c0_i32_0 : i32, i32, i32
  }
  func.func @transform_6(%arg0: i32, %arg1: i32) -> (i32, i32, i32) {
    %c0_i32 = arith.constant 0 : i32
    %c0_i32_0 = arith.constant 0 : i32
    %c0_i32_1 = arith.constant 0 : i32
    return %arg1, %c0_i32, %c0_i32_0 : i32, i32, i32
  }
  func.func @transform_7(%arg0: i32, %arg1: i32) -> (i32, i32, i32) {
    %c0_i32 = arith.constant 0 : i32
    %c0_i32_0 = arith.constant 0 : i32
    %c0_i32_1 = arith.constant 0 : i32
    return %arg1, %c0_i32, %c0_i32_0 : i32, i32, i32
  }
  func.func @transform_8(%arg0: i32, %arg1: i32) -> (i32, i32, i32) {
    %c0_i32 = arith.constant 0 : i32
    %c0_i32_0 = arith.constant 0 : i32
    %c0_i32_1 = arith.constant 0 : i32
    return %arg1, %c0_i32, %c0_i32_0 : i32, i32, i32
  }
  func.func @transform_9(%arg0: i32, %arg1: i32) -> (i32, i32, i32) {
    %c0_i32 = arith.constant 0 : i32
    %c0_i32_0 = arith.constant 0 : i32
    %c0_i32_1 = arith.constant 0 : i32
    return %arg1, %c0_i32, %c0_i32_0 : i32, i32, i32
  }
  func.func @transform_10(%arg0: i32, %arg1: i32) -> (i32, i32) {
    %c0_i32 = arith.constant 0 : i32
    %c0_i32_0 = arith.constant 0 : i32
    %c0_i32_1 = arith.constant 0 : i32
    return %c0_i32, %c0_i32_0 : i32, i32
  }
  func.func @transform_11(%arg0: i32, %arg1: i32) -> (i32, i32, i32) {
    %c0_i32 = arith.constant 0 : i32
    %c0_i32_0 = arith.constant 0 : i32
    %c0_i32_1 = arith.constant 0 : i32
    return %arg0, %c0_i32, %c0_i32_0 : i32, i32, i32
  }
  func.func @transform_12(%arg0: i32, %arg1: i32) -> (i32, i32, i32) {
    %c0_i32 = arith.constant 0 : i32
    %c0_i32_0 = arith.constant 0 : i32
    %c0_i32_1 = arith.constant 0 : i32
    return %arg0, %c0_i32, %c0_i32_0 : i32, i32, i32
  }
}

</mosaic_0001>

<llo_original>
// kernel: tpu_custom_call.1
$region0: #{tpu_custom_call.1}
  #allocation0 [shape = 'u32[]', space=smem, size = 0x4, offset = 0x4, fixed_abs, tag = 'smem constant byte address 0x4 - core index']
  #allocation1 [shape = 'u32[144,128]{1,0:T(1,128)}', space=vmem, size = 0x12000, scoped, tag = 'internal scratch']
  #allocation2 [shape = 'f32[8,32]{1,0:T(8,128)}', space=vmem, size = 0x1000, scoped, tag = 'scratch operand']
  #allocation3 [shape = 'f32[1,8,8]{2,1,0:T(8,128)}', space=vmem, size = 0x1000, scoped, tag = 'scratch operand']
  %s0 = inlined_call_operand.vmem [shape: f32[2,8,32], index: 0, kind: input, shape index: {}]
  %s1 = inlined_call_operand.vmem [shape: f32[2,8,32], index: 1, kind: input, shape index: {}]
  %s2 = inlined_call_operand.vmem [shape: f32[2,8,32], index: 2, kind: input, shape index: {}]
  %s3 = inlined_call_operand.vmem [shape: f32[2,32,8], index: 3, kind: input, shape index: {}]
  %s4 = inlined_call_operand.vmem [shape: f32[2,32,8], index: 4, kind: input, shape index: {}]
  %s5 = inlined_call_operand.vmem [shape: f32[2,32,8], index: 5, kind: input, shape index: {}]
  %s6 = inlined_call_operand.vmem [shape: f32[2,1,8], index: 6, kind: input, shape index: {}]
  %s7 = inlined_call_operand.vmem [shape: f32[2,1,8], index: 7, kind: input, shape index: {}]
  %s8 = inlined_call_operand.vmem [shape: f32[2,1,8], index: 8, kind: input, shape index: {}]
  %s9 = inlined_call_operand.vmem [shape: f32[2,8,32], index: 9, kind: input, shape index: {}]
  %s10 = inlined_call_operand.vmem [shape: f32[1,32], index: 10, kind: input, shape index: {}]
  %s11 = inlined_call_operand.hbm [shape: f32[2,8,32], index: 11, kind: output, shape index: {0}]
  %s12 = inlined_call_operand.hbm [shape: f32[2,8,8], index: 12, kind: output, shape index: {1}]
  %13 = xla_tuple %s11, %s12
  %s14 = sld [smem:[#allocation0]]
  $region93: #{tpu_custom_call.1} parent=0
    _
  %s16 = ssub.s32 1, %s14
  %s17 = scalar_select 0, %s16, %s14
  $region1: #{tpu_custom_call.1} parent=0
    #allocation4 [shape = 'u8[8192]{0}', space=vmem, size = 0x2000, scoped, tag = 'output window, operand 0']
    #allocation5 [shape = 's32[2]{0}', space=sflag, size = 0x8, scoped, tag = 'scoped memory for tpu_custom_call.1']
    #allocation6 [shape = 'u8[8192]{0}', space=vmem, size = 0x2000, scoped, tag = 'output window, operand 1']
    #allocation7 [shape = 's32[2]{0}', space=sflag, size = 0x8, scoped, tag = 'scoped memory for tpu_custom_call.1']
    %18 = vsyncpa [#allocation5], 0
    %s19 = scalar_lea.sflag [#allocation5], 1
    %20 = vsyncpa %s19, 0
    %21 = vsyncpa [#allocation7], 0
    %s22 = scalar_lea.sflag [#allocation7], 1
    %23 = vsyncpa %s22, 0
    loop: start=0, step=1, limit=6
    $region2: #{tpu_custom_call.1} parent=1 // loop_pre_header
      _
    $region3: #{tpu_custom_call.1} parent=1 // loop_header
      %s25 = sphi 0, %s29
      %p26 = scmp.ge.s32.totalorder %s25, 6
      %s32 = sphi 0, %s44
      %s33 = sphi 0, %s40
      %s34 = sphi 0, %s32
      %s35 = sphi 0, %s33
      %s36 = sphi 0, %s34
      %s37 = sphi 0, %s35
      %s47 = sphi 0, %s49
      %s50 = sphi 0, %s47
      %s51 = sphi 0, %s50
      %s67 = sphi 0, %s51
      %s73 = sphi 0, %s75
      %s76 = sphi 0, %s73
      %s77 = sphi 0, %s76
      %s93 = sphi 0, %s77
      %s99 = sphi 0, %s101
      %s102 = sphi 0, %s99
      %s103 = sphi 0, %s102
      %s119 = sphi 0, %s103
      %s125 = sphi 0, %s127
      %s128 = sphi 0, %s125
      %s129 = sphi 0, %s128
      %s145 = sphi 0, %s129
      %s151 = sphi 0, %s153
      %s154 = sphi 0, %s151
      %s155 = sphi 0, %s154
      %s171 = sphi 0, %s155
      %s177 = sphi 0, %s179
      %s180 = sphi 0, %s177
      %s181 = sphi 0, %s180
      %s197 = sphi 0, %s181
      %s203 = sphi 0, %s205
      %s206 = sphi 0, %s203
      %s207 = sphi 0, %s206
      %s223 = sphi 0, %s207
      %s229 = sphi 0, %s231
      %s232 = sphi 0, %s229
      %s233 = sphi 0, %s232
      %s249 = sphi 0, %s233
      %s255 = sphi 0, %s257
      %s258 = sphi 0, %s255
      %s259 = sphi 0, %s258
      %s275 = sphi 0, %s259
      %s281 = sphi 0, %s283
      %s284 = sphi 0, %s281
      %s285 = sphi 0, %s284
      %s301 = sphi 0, %s285
      %s305 = sphi 0, %s305
      %s307 = sphi 0, %s305
      %s308 = sphi 0, %s307
      %s322 = sphi 0, %s308
      %s328 = sphi 0, %s330
      %s331 = sphi 0, %s328
      %s332 = sphi 0, %s331
      %s348 = sphi 0, %s332
      %s354 = sphi 0, %s356
      %s357 = sphi 0, %s354
      %s358 = sphi 0, %s357
      %s374 = sphi 0, %s358
    $region4: #{tpu_custom_call.1} parent=1 // loop_header_branch
      %28 = sbr.rel (%p26) target = $region8
    $region5: #{tpu_custom_call.1} parent=1 // loop_body
      %s30 = ssub.s32 %s25, 1
      %s31 = ssub.s32 %s25, 2
      %s38 = sadd.s32 1, %s33
      %p39 = scmp.ge.s32.totalorder %s38, 2
      %s40 = scalar_select %p39, 0, %s38
      %s41 = sadd.s32 1, %s32
      %s42 = scalar_select %p39, %s41, %s32
      %p43 = scmp.ge.s32.totalorder %s42, 2
      %s44 = scalar_select %p43, 0, %s42
      %s45 = ssub.s32 %s32, %s44
      %p46 = scmp.eq.s32.totalorder %s45, 0
      %s48 = sadd.s32 %s47, 1
      %s49 = scalar_select %p46, %s47, %s48
      %p52 = pneg %p46
      %p53 = scmp.eq.s32.totalorder %s25, 3
      %p54 = por %p52, %p53
      %p55 = scmp.ne.s32.totalorder %s47, %s50
      %p56 = scmp.eq.s32.totalorder %s25, 0
      %p57 = por %p55, %p56
      %p58 = scmp.ne.s32.totalorder %s47, %s50
      %p59 = scmp.eq.s32.totalorder %s30, 3
      %p60 = por %p58, %p59
      %p61 = scmp.ne.s32.totalorder %s50, %s51
      %p62 = scmp.eq.s32.totalorder %s30, 0
      %p63 = por %p61, %p62
      %p64 = scmp.ne.s32.totalorder %s50, %s51
      %p65 = scmp.eq.s32.totalorder %s31, 3
      %p66 = por %p64, %p65
      %p68 = scmp.ne.s32.totalorder %s51, %s67
      %p69 = scmp.eq.s32.totalorder %s31, 0
      %p70 = por %p68, %p69
      %s71 = ssub.s32 %s32, %s44
      %p72 = scmp.eq.s32.totalorder %s71, 0
      %s74 = sadd.s32 %s73, 1
      %s75 = scalar_select %p72, %s73, %s74
      %p78 = pneg %p72
      %p79 = scmp.eq.s32.totalorder %s25, 3
      %p80 = por %p78, %p79
      %p81 = scmp.ne.s32.totalorder %s73, %s76
      %p82 = scmp.eq.s32.totalorder %s25, 0
      %p83 = por %p81, %p82
      %p84 = scmp.ne.s32.totalorder %s73, %s76
      %p85 = scmp.eq.s32.totalorder %s30, 3
      %p86 = por %p84, %p85
      %p87 = scmp.ne.s32.totalorder %s76, %s77
      %p88 = scmp.eq.s32.totalorder %s30, 0
      %p89 = por %p87, %p88
      %p90 = scmp.ne.s32.totalorder %s76, %s77
      %p91 = scmp.eq.s32.totalorder %s31, 3
      %p92 = por %p90, %p91
      %p94 = scmp.ne.s32.totalorder %s77, %s93
      %p95 = scmp.eq.s32.totalorder %s31, 0
      %p96 = por %p94, %p95
      %s97 = ssub.s32 %s32, %s44
      %p98 = scmp.eq.s32.totalorder %s97, 0
      %s100 = sadd.s32 %s99, 1
      %s101 = scalar_select %p98, %s99, %s100
      %p104 = pneg %p98
      %p105 = scmp.eq.s32.totalorder %s25, 3
      %p106 = por %p104, %p105
      %p107 = scmp.ne.s32.totalorder %s99, %s102
      %p108 = scmp.eq.s32.totalorder %s25, 0
      %p109 = por %p107, %p108
      %p110 = scmp.ne.s32.totalorder %s99, %s102
      %p111 = scmp.eq.s32.totalorder %s30, 3
      %p112 = por %p110, %p111
      %p113 = scmp.ne.s32.totalorder %s102, %s103
      %p114 = scmp.eq.s32.totalorder %s30, 0
      %p115 = por %p113, %p114
      %p116 = scmp.ne.s32.totalorder %s102, %s103
      %p117 = scmp.eq.s32.totalorder %s31, 3
      %p118 = por %p116, %p117
      %p120 = scmp.ne.s32.totalorder %s103, %s119
      %p121 = scmp.eq.s32.totalorder %s31, 0
      %p122 = por %p120, %p121
      %s123 = ssub.s32 %s33, %s40
      %p124 = scmp.eq.s32.totalorder %s123, 0
      %s126 = sadd.s32 %s125, 1
      %s127 = scalar_select %p124, %s125, %s126
      %p130 = pneg %p124
      %p131 = scmp.eq.s32.totalorder %s25, 3
      %p132 = por %p130, %p131
      %p133 = scmp.ne.s32.totalorder %s125, %s128
      %p134 = scmp.eq.s32.totalorder %s25, 0
      %p135 = por %p133, %p134
      %p136 = scmp.ne.s32.totalorder %s125, %s128
      %p137 = scmp.eq.s32.totalorder %s30, 3
      %p138 = por %p136, %p137
      %p139 = scmp.ne.s32.totalorder %s128, %s129
      %p140 = scmp.eq.s32.totalorder %s30, 0
      %p141 = por %p139, %p140
      %p142 = scmp.ne.s32.totalorder %s128, %s129
      %p143 = scmp.eq.s32.totalorder %s31, 3
      %p144 = por %p142, %p143
      %p146 = scmp.ne.s32.totalorder %s129, %s145
      %p147 = scmp.eq.s32.totalorder %s31, 0
      %p148 = por %p146, %p147
      %s149 = ssub.s32 %s33, %s40
      %p150 = scmp.eq.s32.totalorder %s149, 0
      %s152 = sadd.s32 %s151, 1
      %s153 = scalar_select %p150, %s151, %s152
      %p156 = pneg %p150
      %p157 = scmp.eq.s32.totalorder %s25, 3
      %p158 = por %p156, %p157
      %p159 = scmp.ne.s32.totalorder %s151, %s154
      %p160 = scmp.eq.s32.totalorder %s25, 0
      %p161 = por %p159, %p160
      %p162 = scmp.ne.s32.totalorder %s151, %s154
      %p163 = scmp.eq.s32.totalorder %s30, 3
      %p164 = por %p162, %p163
      %p165 = scmp.ne.s32.totalorder %s154, %s155
      %p166 = scmp.eq.s32.totalorder %s30, 0
      %p167 = por %p165, %p166
      %p168 = scmp.ne.s32.totalorder %s154, %s155
      %p169 = scmp.eq.s32.totalorder %s31, 3
      %p170 = por %p168, %p169
      %p172 = scmp.ne.s32.totalorder %s155, %s171
      %p173 = scmp.eq.s32.totalorder %s31, 0
      %p174 = por %p172, %p173
      %s175 = ssub.s32 %s33, %s40
      %p176 = scmp.eq.s32.totalorder %s175, 0
      %s178 = sadd.s32 %s177, 1
      %s179 = scalar_select %p176, %s177, %s178
      %p182 = pneg %p176
      %p183 = scmp.eq.s32.totalorder %s25, 3
      %p184 = por %p182, %p183
      %p185 = scmp.ne.s32.totalorder %s177, %s180
      %p186 = scmp.eq.s32.totalorder %s25, 0
      %p187 = por %p185, %p186
      %p188 = scmp.ne.s32.totalorder %s177, %s180
      %p189 = scmp.eq.s32.totalorder %s30, 3
      %p190 = por %p188, %p189
      %p191 = scmp.ne.s32.totalorder %s180, %s181
      %p192 = scmp.eq.s32.totalorder %s30, 0
      %p193 = por %p191, %p192
      %p194 = scmp.ne.s32.totalorder %s180, %s181
      %p195 = scmp.eq.s32.totalorder %s31, 3
      %p196 = por %p194, %p195
      %p198 = scmp.ne.s32.totalorder %s181, %s197
      %p199 = scmp.eq.s32.totalorder %s31, 0
      %p200 = por %p198, %p199
      %s201 = ssub.s32 %s33, %s40
      %p202 = scmp.eq.s32.totalorder %s201, 0
      %s204 = sadd.s32 %s203, 1
      %s205 = scalar_select %p202, %s203, %s204
      %p208 = pneg %p202
      %p209 = scmp.eq.s32.totalorder %s25, 3
      %p210 = por %p208, %p209
      %p211 = scmp.ne.s32.totalorder %s203, %s206
      %p212 = scmp.eq.s32.totalorder %s25, 0
      %p213 = por %p211, %p212
      %p214 = scmp.ne.s32.totalorder %s203, %s206
      %p215 = scmp.eq.s32.totalorder %s30, 3
      %p216 = por %p214, %p215
      %p217 = scmp.ne.s32.totalorder %s206, %s207
      %p218 = scmp.eq.s32.totalorder %s30, 0
      %p219 = por %p217, %p218
      %p220 = scmp.ne.s32.totalorder %s206, %s207
      %p221 = scmp.eq.s32.totalorder %s31, 3
      %p222 = por %p220, %p221
      %p224 = scmp.ne.s32.totalorder %s207, %s223
      %p225 = scmp.eq.s32.totalorder %s31, 0
      %p226 = por %p224, %p225
      %s227 = ssub.s32 %s33, %s40
      %p228 = scmp.eq.s32.totalorder %s227, 0
      %s230 = sadd.s32 %s229, 1
      %s231 = scalar_select %p228, %s229, %s230
      %p234 = pneg %p228
      %p235 = scmp.eq.s32.totalorder %s25, 3
      %p236 = por %p234, %p235
      %p237 = scmp.ne.s32.totalorder %s229, %s232
      %p238 = scmp.eq.s32.totalorder %s25, 0
      %p239 = por %p237, %p238
      %p240 = scmp.ne.s32.totalorder %s229, %s232
      %p241 = scmp.eq.s32.totalorder %s30, 3
      %p242 = por %p240, %p241
      %p243 = scmp.ne.s32.totalorder %s232, %s233
      %p244 = scmp.eq.s32.totalorder %s30, 0
      %p245 = por %p243, %p244
      %p246 = scmp.ne.s32.totalorder %s232, %s233
      %p247 = scmp.eq.s32.totalorder %s31, 3
      %p248 = por %p246, %p247
      %p250 = scmp.ne.s32.totalorder %s233, %s249
      %p251 = scmp.eq.s32.totalorder %s31, 0
      %p252 = por %p250, %p251
      %s253 = ssub.s32 %s33, %s40
      %p254 = scmp.eq.s32.totalorder %s253, 0
      %s256 = sadd.s32 %s255, 1
      %s257 = scalar_select %p254, %s255, %s256
      %p260 = pneg %p254
      %p261 = scmp.eq.s32.totalorder %s25, 3
      %p262 = por %p260, %p261
      %p263 = scmp.ne.s32.totalorder %s255, %s258
      %p264 = scmp.eq.s32.totalorder %s25, 0
      %p265 = por %p263, %p264
      %p266 = scmp.ne.s32.totalorder %s255, %s258
      %p267 = scmp.eq.s32.totalorder %s30, 3
      %p268 = por %p266, %p267
      %p269 = scmp.ne.s32.totalorder %s258, %s259
      %p270 = scmp.eq.s32.totalorder %s30, 0
      %p271 = por %p269, %p270
      %p272 = scmp.ne.s32.totalorder %s258, %s259
      %p273 = scmp.eq.s32.totalorder %s31, 3
      %p274 = por %p272, %p273
      %p276 = scmp.ne.s32.totalorder %s259, %s275
      %p277 = scmp.eq.s32.totalorder %s31, 0
      %p278 = por %p276, %p277
      %s279 = ssub.s32 %s33, %s40
      %p280 = scmp.eq.s32.totalorder %s279, 0
      %s282 = sadd.s32 %s281, 1
      %s283 = scalar_select %p280, %s281, %s282
      %p286 = pneg %p280
      %p287 = scmp.eq.s32.totalorder %s25, 3
      %p288 = por %p286, %p287
      %p289 = scmp.ne.s32.totalorder %s281, %s284
      %p290 = scmp.eq.s32.totalorder %s25, 0
      %p291 = por %p289, %p290
      %p292 = scmp.ne.s32.totalorder %s281, %s284
      %p293 = scmp.eq.s32.totalorder %s30, 3
      %p294 = por %p292, %p293
      %p295 = scmp.ne.s32.totalorder %s284, %s285
      %p296 = scmp.eq.s32.totalorder %s30, 0
      %p297 = por %p295, %p296
      %p298 = scmp.ne.s32.totalorder %s284, %s285
      %p299 = scmp.eq.s32.totalorder %s31, 3
      %p300 = por %p298, %p299
      %p302 = scmp.ne.s32.totalorder %s285, %s301
      %p303 = scmp.eq.s32.totalorder %s31, 0
      %p304 = por %p302, %p303
      %s306 = sadd.s32 %s305, 1
      %p309 = scmp.eq.s32.totalorder %s25, 3
      %p310 = scmp.ne.s32.totalorder %s305, %s307
      %p311 = scmp.eq.s32.totalorder %s25, 0
      %p312 = por %p310, %p311
      %p313 = scmp.ne.s32.totalorder %s305, %s307
      %p314 = scmp.eq.s32.totalorder %s30, 3
      %p315 = por %p313, %p314
      %p316 = scmp.ne.s32.totalorder %s307, %s308
      %p317 = scmp.eq.s32.totalorder %s30, 0
      %p318 = por %p316, %p317
      %p319 = scmp.ne.s32.totalorder %s307, %s308
      %p320 = scmp.eq.s32.totalorder %s31, 3
      %p321 = por %p319, %p320
      %p323 = scmp.ne.s32.totalorder %s308, %s322
      %p324 = scmp.eq.s32.totalorder %s31, 0
      %p325 = por %p323, %p324
      %s326 = ssub.s32 %s32, %s44
      %p327 = scmp.eq.s32.totalorder %s326, 0
      %s329 = sadd.s32 %s328, 1
      %s330 = scalar_select %p327, %s328, %s329
      %p333 = pneg %p327
      %p334 = scmp.eq.s32.totalorder %s25, 3
      %p335 = por %p333, %p334
      %p336 = scmp.ne.s32.totalorder %s328, %s331
      %p337 = scmp.eq.s32.totalorder %s25, 0
      %p338 = por %p336, %p337
      %p339 = scmp.ne.s32.totalorder %s328, %s331
      %p340 = scmp.eq.s32.totalorder %s30, 3
      %p341 = por %p339, %p340
      %p342 = scmp.ne.s32.totalorder %s331, %s332
      %p343 = scmp.eq.s32.totalorder %s30, 0
      %p344 = por %p342, %p343
      %p345 = scmp.ne.s32.totalorder %s331, %s332
      %p346 = scmp.eq.s32.totalorder %s31, 3
      %p347 = por %p345, %p346
      %p349 = scmp.ne.s32.totalorder %s332, %s348
      %p350 = scmp.eq.s32.totalorder %s31, 0
      %p351 = por %p349, %p350
      %s352 = ssub.s32 %s32, %s44
      %p353 = scmp.eq.s32.totalorder %s352, 0
      %s355 = sadd.s32 %s354, 1
      %s356 = scalar_select %p353, %s354, %s355
      %p359 = pneg %p353
      %p360 = scmp.eq.s32.totalorder %s25, 3
      %p361 = por %p359, %p360
      %p362 = scmp.ne.s32.totalorder %s354, %s357
      %p363 = scmp.eq.s32.totalorder %s25, 0
      %p364 = por %p362, %p363
      %p365 = scmp.ne.s32.totalorder %s354, %s357
      %p366 = scmp.eq.s32.totalorder %s30, 3
      %p367 = por %p365, %p366
      %p368 = scmp.ne.s32.totalorder %s357, %s358
      %p369 = scmp.eq.s32.totalorder %s30, 0
      %p370 = por %p368, %p369
      %p371 = scmp.ne.s32.totalorder %s357, %s358
      %p372 = scmp.eq.s32.totalorder %s31, 3
      %p373 = por %p371, %p372
      %p375 = scmp.ne.s32.totalorder %s358, %s374
      %p376 = scmp.eq.s32.totalorder %s31, 0
      %p377 = por %p375, %p376
      %p378 = scmp.le.s32.totalorder 1, %s25
      %p379 = scmp.lt.s32.totalorder %s25, 5
      %p380 = pnand %p378, %p379
      %p381 = pneg %p380
      // Predicated region
      $region9: #{tpu_custom_call.1} parent=5 // pred_check
        _
      $region10: #{tpu_custom_call.1} parent=5 // pred_check_branch
        %383 = sbr.rel (%p380) target = $region12
      $region11: #{tpu_custom_call.1} parent=5 // pred_region
        %s384 = ssub.s32 %s25, 1
        // Predicated region
        $region13: #{tpu_custom_call.1} parent=11 // pred_check
          %p385 = pneg %p318
        $region14: #{tpu_custom_call.1} parent=11 // pred_check_branch
          %387 = sbr.rel (%p385) target = $region16
        $region15: #{tpu_custom_call.1} parent=11 // pred_region
          _
        $region16: #{tpu_custom_call.1} parent=11 // pred_fallthru
          _
      $region12: #{tpu_custom_call.1} parent=5 // pred_fallthru
        _
      %p388 = scmp.lt.s32.totalorder %s25, 4
      // Predicated region
      $region17: #{tpu_custom_call.1} parent=5 // pred_check
        %p389 = pneg %p388
      $region18: #{tpu_custom_call.1} parent=5 // pred_check_branch
        %391 = sbr.rel (%p389) target = $region20
      $region19: #{tpu_custom_call.1} parent=5 // pred_region
        // Predicated region
        $region21: #{tpu_custom_call.1} parent=19 // pred_check
          %p392 = pneg %p57
        $region22: #{tpu_custom_call.1} parent=19 // pred_check_branch
          %394 = sbr.rel (%p392) target = $region24
        $region23: #{tpu_custom_call.1} parent=19 // pred_region
          %p395 = scmp.lt.s32.totalorder %s32, 1
          %s396 = scalar_select %p395, %s32, 1
          %s397 = smul.addr %s396, 8
          %s398 = scalar_lea.vmem %s0, %s397
        $region24: #{tpu_custom_call.1} parent=19 // pred_fallthru
          _
        // Predicated region
        $region25: #{tpu_custom_call.1} parent=19 // pred_check
          %p399 = pneg %p83
        $region26: #{tpu_custom_call.1} parent=19 // pred_check_branch
          %401 = sbr.rel (%p399) target = $region28
        $region27: #{tpu_custom_call.1} parent=19 // pred_region
          %p402 = scmp.lt.s32.totalorder %s32, 1
          %s403 = scalar_select %p402, %s32, 1
          %s404 = smul.addr %s403, 8
          %s405 = scalar_lea.vmem %s1, %s404
        $region28: #{tpu_custom_call.1} parent=19 // pred_fallthru
          _
        // Predicated region
        $region29: #{tpu_custom_call.1} parent=19 // pred_check
          %p406 = pneg %p109
        $region30: #{tpu_custom_call.1} parent=19 // pred_check_branch
          %408 = sbr.rel (%p406) target = $region32
        $region31: #{tpu_custom_call.1} parent=19 // pred_region
          %p409 = scmp.lt.s32.totalorder %s32, 1
          %s410 = scalar_select %p409, %s32, 1
          %s411 = smul.addr %s410, 8
          %s412 = scalar_lea.vmem %s2, %s411
        $region32: #{tpu_custom_call.1} parent=19 // pred_fallthru
          _
        // Predicated region
        $region33: #{tpu_custom_call.1} parent=19 // pred_check
          %p413 = pneg %p135
        $region34: #{tpu_custom_call.1} parent=19 // pred_check_branch
          %415 = sbr.rel (%p413) target = $region36
        $region35: #{tpu_custom_call.1} parent=19 // pred_region
          %p416 = scmp.lt.s32.totalorder %s33, 1
          %s417 = scalar_select %p416, %s33, 1
          %s418 = smul.addr %s417, 4
          %s419 = smul.addr %s418, 8
          %s420 = scalar_lea.vmem %s3, %s419
        $region36: #{tpu_custom_call.1} parent=19 // pred_fallthru
          _
        // Predicated region
        $region37: #{tpu_custom_call.1} parent=19 // pred_check
          %p421 = pneg %p161
        $region38: #{tpu_custom_call.1} parent=19 // pred_check_branch
          %423 = sbr.rel (%p421) target = $region40
        $region39: #{tpu_custom_call.1} parent=19 // pred_region
          %p424 = scmp.lt.s32.totalorder %s33, 1
          %s425 = scalar_select %p424, %s33, 1
          %s426 = smul.addr %s425, 4
          %s427 = smul.addr %s426, 8
          %s428 = scalar_lea.vmem %s4, %s427
        $region40: #{tpu_custom_call.1} parent=19 // pred_fallthru
          _
        // Predicated region
        $region41: #{tpu_custom_call.1} parent=19 // pred_check
          %p429 = pneg %p187
        $region42: #{tpu_custom_call.1} parent=19 // pred_check_branch
          %431 = sbr.rel (%p429) target = $region44
        $region43: #{tpu_custom_call.1} parent=19 // pred_region
          %p432 = scmp.lt.s32.totalorder %s33, 1
          %s433 = scalar_select %p432, %s33, 1
          %s434 = smul.addr %s433, 4
          %s435 = smul.addr %s434, 8
          %s436 = scalar_lea.vmem %s5, %s435
        $region44: #{tpu_custom_call.1} parent=19 // pred_fallthru
          _
        // Predicated region
        $region45: #{tpu_custom_call.1} parent=19 // pred_check
          %p437 = pneg %p213
        $region46: #{tpu_custom_call.1} parent=19 // pred_check_branch
          %439 = sbr.rel (%p437) target = $region48
        $region47: #{tpu_custom_call.1} parent=19 // pred_region
          %p440 = scmp.lt.s32.totalorder %s33, 1
          %s441 = scalar_select %p440, %s33, 1
          %s442 = scalar_lea.vmem %s6, %s441
        $region48: #{tpu_custom_call.1} parent=19 // pred_fallthru
          _
        // Predicated region
        $region49: #{tpu_custom_call.1} parent=19 // pred_check
          %p443 = pneg %p239
        $region50: #{tpu_custom_call.1} parent=19 // pred_check_branch
          %445 = sbr.rel (%p443) target = $region52
        $region51: #{tpu_custom_call.1} parent=19 // pred_region
          %p446 = scmp.lt.s32.totalorder %s33, 1
          %s447 = scalar_select %p446, %s33, 1
          %s448 = scalar_lea.vmem %s7, %s447
        $region52: #{tpu_custom_call.1} parent=19 // pred_fallthru
          _
        // Predicated region
        $region53: #{tpu_custom_call.1} parent=19 // pred_check
          %p449 = pneg %p265
        $region54: #{tpu_custom_call.1} parent=19 // pred_check_branch
          %451 = sbr.rel (%p449) target = $region56
        $region55: #{tpu_custom_call.1} parent=19 // pred_region
          %p452 = scmp.lt.s32.totalorder %s33, 1
          %s453 = scalar_select %p452, %s33, 1
          %s454 = scalar_lea.vmem %s8, %s453
        $region56: #{tpu_custom_call.1} parent=19 // pred_fallthru
          _
        // Predicated region
        $region57: #{tpu_custom_call.1} parent=19 // pred_check
          %p455 = pneg %p291
        $region58: #{tpu_custom_call.1} parent=19 // pred_check_branch
          %457 = sbr.rel (%p455) target = $region60
        $region59: #{tpu_custom_call.1} parent=19 // pred_region
          %p458 = scmp.lt.s32.totalorder %s33, 1
          %s459 = scalar_select %p458, %s33, 1
          %s460 = smul.addr %s459, 8
          %s461 = scalar_lea.vmem %s9, %s460
        $region60: #{tpu_custom_call.1} parent=19 // pred_fallthru
          _
      $region20: #{tpu_custom_call.1} parent=5 // pred_fallthru
        _
      %p462 = scmp.le.s32.totalorder 1, %s25
      %p463 = scmp.lt.s32.totalorder %s25, 5
      %p464 = pnand %p462, %p463
      %p465 = pneg %p464
      // Predicated region
      $region61: #{tpu_custom_call.1} parent=5 // pred_check
        _
      $region62: #{tpu_custom_call.1} parent=5 // pred_check_branch
        %467 = sbr.rel (%p464) target = $region64
      $region63: #{tpu_custom_call.1} parent=5 // pred_region
        %s468 = ssub.s32 %s25, 1
        %p469 = scmp.lt.s32.totalorder %s34, 1
        %s470 = scalar_select %p469, %s34, 1
        %s471 = smul.addr %s470, 8
        %s472 = scalar_lea.vmem %s0, %s471
        %p473 = pneg %p63
        %p474 = pneg %p60
        %p475 = scmp.lt.s32.totalorder %s34, 1
        %s476 = scalar_select %p475, %s34, 1
        %s477 = smul.addr %s476, 8
        %s478 = scalar_lea.vmem %s1, %s477
        %p479 = pneg %p89
        %p480 = pneg %p86
        %p481 = scmp.lt.s32.totalorder %s34, 1
        %s482 = scalar_select %p481, %s34, 1
        %s483 = smul.addr %s482, 8
        %s484 = scalar_lea.vmem %s2, %s483
        %p485 = pneg %p115
        %p486 = pneg %p112
        %p487 = scmp.lt.s32.totalorder %s35, 1
        %s488 = scalar_select %p487, %s35, 1
        %s489 = smul.addr %s488, 4
        %s490 = smul.addr %s489, 8
        %s491 = scalar_lea.vmem %s3, %s490
        %p492 = pneg %p141
        %p493 = pneg %p138
        %p494 = scmp.lt.s32.totalorder %s35, 1
        %s495 = scalar_select %p494, %s35, 1
        %s496 = smul.addr %s495, 4
        %s497 = smul.addr %s496, 8
        %s498 = scalar_lea.vmem %s4, %s497
        %p499 = pneg %p167
        %p500 = pneg %p164
        %p501 = scmp.lt.s32.totalorder %s35, 1
        %s502 = scalar_select %p501, %s35, 1
        %s503 = smul.addr %s502, 4
        %s504 = smul.addr %s503, 8
        %s505 = scalar_lea.vmem %s5, %s504
        %p506 = pneg %p193
        %p507 = pneg %p190
        %p508 = scmp.lt.s32.totalorder %s35, 1
        %s509 = scalar_select %p508, %s35, 1
        %s510 = scalar_lea.vmem %s6, %s509
        %p511 = pneg %p219
        %p512 = pneg %p216
        %p513 = scmp.lt.s32.totalorder %s35, 1
        %s514 = scalar_select %p513, %s35, 1
        %s515 = scalar_lea.vmem %s7, %s514
        %p516 = pneg %p245
        %p517 = pneg %p242
        %p518 = scmp.lt.s32.totalorder %s35, 1
        %s519 = scalar_select %p518, %s35, 1
        %s520 = scalar_lea.vmem %s8, %s519
        %p521 = pneg %p271
        %p522 = pneg %p268
        %p523 = scmp.lt.s32.totalorder %s35, 1
        %s524 = scalar_select %p523, %s35, 1
        %s525 = smul.addr %s524, 8
        %s526 = scalar_lea.vmem %s9, %s525
        %p527 = pneg %p297
        %p528 = pneg %p294
        %p529 = pneg %p318
        %p530 = pneg %p315
        %p531 = pneg %p344
        %p532 = pneg %p341
        %s533 = sand.u32 %s331, 1
        %s534 = scalar_lea.sflag [#allocation5], %s533
        %s535 = sand.u32 %s331, 1
        %s536 = smul.addr %s535, 8
        %s537 = scalar_lea.vmem [#allocation4], %s536
        %p538 = pneg %p370
        %p539 = pneg %p367
        %s540 = sand.u32 %s357, 1
        %s541 = scalar_lea.sflag [#allocation7], %s540
        %s542 = sand.u32 %s357, 1
        %s543 = smul.addr %s542, 8
        %s544 = scalar_lea.vmem [#allocation6], %s543
        %p545 = scmp.lt.s32.totalorder %s34, 1
        %s546 = scalar_select %p545, %s34, 1
        %s547 = smul.addr %s546, 8
        %s548 = scalar_lea.vmem %s0, %s547
        %p549 = scmp.lt.s32.totalorder %s34, 1
        %s550 = scalar_select %p549, %s34, 1
        %s551 = smul.addr %s550, 8
        %s552 = scalar_lea.vmem %s1, %s551
        %p553 = scmp.lt.s32.totalorder %s34, 1
        %s554 = scalar_select %p553, %s34, 1
        %s555 = smul.addr %s554, 8
        %s556 = scalar_lea.vmem %s2, %s555
        %p557 = scmp.lt.s32.totalorder %s35, 1
        %s558 = scalar_select %p557, %s35, 1
        %s559 = smul.addr %s558, 4
        %s560 = smul.addr %s559, 8
        %s561 = scalar_lea.vmem %s3, %s560
        %p562 = scmp.lt.s32.totalorder %s35, 1
        %s563 = scalar_select %p562, %s35, 1
        %s564 = smul.addr %s563, 4
        %s565 = smul.addr %s564, 8
        %s566 = scalar_lea.vmem %s4, %s565
        %p567 = scmp.lt.s32.totalorder %s35, 1
        %s568 = scalar_select %p567, %s35, 1
        %s569 = smul.addr %s568, 4
        %s570 = smul.addr %s569, 8
        %s571 = scalar_lea.vmem %s5, %s570
        %p572 = scmp.lt.s32.totalorder %s35, 1
        %s573 = scalar_select %p572, %s35, 1
        %s574 = scalar_lea.vmem %s6, %s573
        %p575 = scmp.lt.s32.totalorder %s35, 1
        %s576 = scalar_select %p575, %s35, 1
        %s577 = scalar_lea.vmem %s7, %s576
        %p578 = scmp.lt.s32.totalorder %s35, 1
        %s579 = scalar_select %p578, %s35, 1
        %s580 = scalar_lea.vmem %s8, %s579
        %p581 = scmp.lt.s32.totalorder %s35, 1
        %s582 = scalar_select %p581, %s35, 1
        %s583 = smul.addr %s582, 8
        %s584 = scalar_lea.vmem %s9, %s583
        %p585 = scmp.eq.s32.totalorder %s35, 0
        // Predicated region
        $region65: #{tpu_custom_call.1} parent=63 // pred_check
          %p586 = pneg %p585
        $region66: #{tpu_custom_call.1} parent=63 // pred_check_branch
          %588 = sbr.rel (%p586) target = $region68
        $region67: #{tpu_custom_call.1} parent=63 // pred_region
          %vm589 = vcmask 261120
          %590 = vst.msk [vmem:[#allocation2] sm:$0xff] %vm589, 0.0
          %vm591 = vcmask 64512
          %592 = vst.msk [vmem:[#allocation3] sm:$0xff] %vm591, 0.0
        $region68: #{tpu_custom_call.1} parent=63 // pred_fallthru
          _
        %v593 = vld [vmem:[%s548] sm:$0xff]
        %v594 = vld [vmem:[%s552] sm:$0xff]
        %v595 = vld [vmem:[%s556] sm:$0xff]
        %v596 = vld [vmem:[%s561] sm:$0xff]
        %v597 = vld [vmem:[%s561 + $0x8] sm:$0xff]
        %v598 = vld [vmem:[%s561 + $0x10] sm:$0xff]
        %v599 = vld [vmem:[%s561 + $0x18] sm:$0xff]
        %v600 = vld [vmem:[%s574] sm:$0x1]
        %v602 = vlaneseq
        %v603 = vshrl.u32 %v602, 7
        %v604 = vsub.s32 0, %v603
        %v605 = vrot.slane %v600, %v604
        %vm607 = vcmask 261120
        %v609 = vsel %vm607, %v593, 0
        %611 = vmatprep.subr.mxu0 0.0
        %612 = vmatpush1.msra.mxu0 %v596
        %613 = vmatprep.subr.mxu0 0.0
        %614 = vmatpush1.msra.mxu0 %v597
        %615 = vmatprep.subr.mxu0 0.0
        %616 = vmatpush1.msra.mxu0 %v598
        %617 = vmatprep.subr.mxu0 0.0
        %618 = vmatpush1.msra.mxu0 %v599
        %619 = vmatprep.subr.mxu0 0.0
        %620 = vmatpush1.msra.mxu0 0.0
        %621 = vmatprep.subr.mxu0 0.0
        %622 = vmatpush1.msra.mxu0 0.0
        %623 = vmatprep.subr.mxu0 0.0
        %624 = vmatpush1.msra.mxu0 0.0
        %625 = vmatprep.subr.mxu0 0.0
        %626 = vmatpush1.msra.mxu0 0.0
        %627 = vmatprep.subr.mxu0 0.0
        %628 = vmatpush1.msra.mxu0 0.0
        %629 = vmatprep.subr.mxu0 0.0
        %630 = vmatpush1.msra.mxu0 0.0
        %631 = vmatprep.subr.mxu0 0.0
        %632 = vmatpush1.msra.mxu0 0.0
        %633 = vmatprep.subr.mxu0 0.0
        %634 = vmatpush1.msra.mxu0 0.0
        %635 = vmatprep.subr.mxu0 0.0
        %636 = vmatpush1.msra.mxu0 0.0
        %637 = vmatprep.subr.mxu0 0.0
        %638 = vmatpush1.msra.mxu0 0.0
        %639 = vmatprep.subr.mxu0 0.0
        %640 = vmatpush1.msra.mxu0 0.0
        %641 = vmatprep.subr.mxu0 0.0
        %642 = vmatpush1.msra.mxu0 0.0
        %643 = vmatprep.subr.mxu0 0.0
        %644 = vmatpush1.msra.mxu0 0.0
        %645 = vmatprep.subr.mxu0 0.0
        %646 = vmatpush1.msra.mxu0 0.0
        %647 = vmatprep.subr.mxu0 0.0
        %648 = vmatpush1.msra.mxu0 0.0
        %649 = vmatprep.subr.mxu0 0.0
        %650 = vmatpush1.msra.mxu0 0.0
        %651 = vmatprep.subr.mxu0 0.0
        %652 = vmatpush1.msra.mxu0 0.0
        %653 = vmatprep.subr.mxu0 0.0
        %654 = vmatpush1.msra.mxu0 0.0
        %655 = vmatprep.subr.mxu0 0.0
        %656 = vmatpush1.msra.mxu0 0.0
        %657 = vmatprep.subr.mxu0 0.0
        %658 = vmatpush1.msra.mxu0 0.0
        %659 = vmatprep.subr.mxu0 0.0
        %660 = vmatpush1.msra.mxu0 0.0
        %661 = vmatprep.subr.mxu0 0.0
        %662 = vmatpush1.msra.mxu0 0.0
        %663 = vmatprep.subr.mxu0 0.0
        %664 = vmatpush1.msra.mxu0 0.0
        %665 = vmatprep.subr.mxu0 0.0
        %666 = vmatpush1.msra.mxu0 0.0
        %667 = vmatprep.subr.mxu0 0.0
        %668 = vmatpush1.msra.mxu0 0.0
        %669 = vmatprep.subr.mxu0 0.0
        %670 = vmatpush1.msra.mxu0 0.0
        %671 = vmatprep.subr.mxu0 0.0
        %672 = vmatpush1.msra.mxu0 0.0
        %673 = vmatprep.subr.mxu0 0.0
        %674 = vmatpush1.msra.mxu0 0.0
        %675 = vmatprep.mubr.f32.mxu0 0.0
        %676 = vmatmul.mubr.f32.gmra.mrb[0].mxu0 %v609
        %v677 = vpop.f32.mrb[0].mxu0
        %v678 = vadd.f32 %v605, %v677
        %v679 = vpop.f32.mrb[0].mxu0
        %680 = vdwg.mxu0
        %v681 = vld [vmem:[%s566] sm:$0xff]
        %v682 = vld [vmem:[%s566 + $0x8] sm:$0xff]
        %v683 = vld [vmem:[%s566 + $0x10] sm:$0xff]
        %v684 = vld [vmem:[%s566 + $0x18] sm:$0xff]
        %v685 = vld [vmem:[%s577] sm:$0x1]
        %v687 = vlaneseq
        %v688 = vshrl.u32 %v687, 7
        %v689 = vsub.s32 0, %v688
        %v690 = vrot.slane %v685, %v689
        %v693 = vsel %vm607, %v594, 0
        %695 = vmatprep.subr.mxu0 0.0
        %696 = vmatpush1.msra.mxu0 %v681
        %697 = vmatprep.subr.mxu0 0.0
        %698 = vmatpush1.msra.mxu0 %v682
        %699 = vmatprep.subr.mxu0 0.0
        %700 = vmatpush1.msra.mxu0 %v683
        %701 = vmatprep.subr.mxu0 0.0
        %702 = vmatpush1.msra.mxu0 %v684
        %703 = vmatprep.subr.mxu0 0.0
        %704 = vmatpush1.msra.mxu0 0.0
        %705 = vmatprep.subr.mxu0 0.0
        %706 = vmatpush1.msra.mxu0 0.0
        %707 = vmatprep.subr.mxu0 0.0
        %708 = vmatpush1.msra.mxu0 0.0
        %709 = vmatprep.subr.mxu0 0.0
        %710 = vmatpush1.msra.mxu0 0.0
        %711 = vmatprep.subr.mxu0 0.0
        %712 = vmatpush1.msra.mxu0 0.0
        %713 = vmatprep.subr.mxu0 0.0
        %714 = vmatpush1.msra.mxu0 0.0
        %715 = vmatprep.subr.mxu0 0.0
        %716 = vmatpush1.msra.mxu0 0.0
        %717 = vmatprep.subr.mxu0 0.0
        %718 = vmatpush1.msra.mxu0 0.0
        %719 = vmatprep.subr.mxu0 0.0
        %720 = vmatpush1.msra.mxu0 0.0
        %721 = vmatprep.subr.mxu0 0.0
        %722 = vmatpush1.msra.mxu0 0.0
        %723 = vmatprep.subr.mxu0 0.0
        %724 = vmatpush1.msra.mxu0 0.0
        %725 = vmatprep.subr.mxu0 0.0
        %726 = vmatpush1.msra.mxu0 0.0
        %727 = vmatprep.subr.mxu0 0.0
        %728 = vmatpush1.msra.mxu0 0.0
        %729 = vmatprep.subr.mxu0 0.0
        %730 = vmatpush1.msra.mxu0 0.0
        %731 = vmatprep.subr.mxu0 0.0
        %732 = vmatpush1.msra.mxu0 0.0
        %733 = vmatprep.subr.mxu0 0.0
        %734 = vmatpush1.msra.mxu0 0.0
        %735 = vmatprep.subr.mxu0 0.0
        %736 = vmatpush1.msra.mxu0 0.0
        %737 = vmatprep.subr.mxu0 0.0
        %738 = vmatpush1.msra.mxu0 0.0
        %739 = vmatprep.subr.mxu0 0.0
        %740 = vmatpush1.msra.mxu0 0.0
        %741 = vmatprep.subr.mxu0 0.0
        %742 = vmatpush1.msra.mxu0 0.0
        %743 = vmatprep.subr.mxu0 0.0
        %744 = vmatpush1.msra.mxu0 0.0
        %745 = vmatprep.subr.mxu0 0.0
        %746 = vmatpush1.msra.mxu0 0.0
        %747 = vmatprep.subr.mxu0 0.0
        %748 = vmatpush1.msra.mxu0 0.0
        %749 = vmatprep.subr.mxu0 0.0
        %750 = vmatpush1.msra.mxu0 0.0
        %751 = vmatprep.subr.mxu0 0.0
        %752 = vmatpush1.msra.mxu0 0.0
        %753 = vmatprep.subr.mxu0 0.0
        %754 = vmatpush1.msra.mxu0 0.0
        %755 = vmatprep.subr.mxu0 0.0
        %756 = vmatpush1.msra.mxu0 0.0
        %757 = vmatprep.subr.mxu0 0.0
        %758 = vmatpush1.msra.mxu0 0.0
        %759 = vmatprep.mubr.f32.mxu0 0.0
        %760 = vmatmul.mubr.f32.gmra.mrb[0].mxu0 %v693
        %v761 = vpop.f32.mrb[0].mxu0
        %v762 = vadd.f32 %v690, %v761
        %v763 = vpop.f32.mrb[0].mxu0
        %764 = vdwg.mxu0
        %v765 = vld [vmem:[%s571] sm:$0xff]
        %v766 = vld [vmem:[%s571 + $0x8] sm:$0xff]
        %v767 = vld [vmem:[%s571 + $0x10] sm:$0xff]
        %v768 = vld [vmem:[%s571 + $0x18] sm:$0xff]
        %v769 = vld [vmem:[%s580] sm:$0x1]
        %v771 = vlaneseq
        %v772 = vshrl.u32 %v771, 7
        %v773 = vsub.s32 0, %v772
        %v774 = vrot.slane %v769, %v773
        %v777 = vsel %vm607, %v595, 0
        %779 = vmatprep.subr.mxu0 0.0
        %780 = vmatpush1.msra.mxu0 %v765
        %781 = vmatprep.subr.mxu0 0.0
        %782 = vmatpush1.msra.mxu0 %v766
        %783 = vmatprep.subr.mxu0 0.0
        %784 = vmatpush1.msra.mxu0 %v767
        %785 = vmatprep.subr.mxu0 0.0
        %786 = vmatpush1.msra.mxu0 %v768
        %787 = vmatprep.subr.mxu0 0.0
        %788 = vmatpush1.msra.mxu0 0.0
        %789 = vmatprep.subr.mxu0 0.0
        %790 = vmatpush1.msra.mxu0 0.0
        %791 = vmatprep.subr.mxu0 0.0
        %792 = vmatpush1.msra.mxu0 0.0
        %793 = vmatprep.subr.mxu0 0.0
        %794 = vmatpush1.msra.mxu0 0.0
        %795 = vmatprep.subr.mxu0 0.0
        %796 = vmatpush1.msra.mxu0 0.0
        %797 = vmatprep.subr.mxu0 0.0
        %798 = vmatpush1.msra.mxu0 0.0
        %799 = vmatprep.subr.mxu0 0.0
        %800 = vmatpush1.msra.mxu0 0.0
        %801 = vmatprep.subr.mxu0 0.0
        %802 = vmatpush1.msra.mxu0 0.0
        %803 = vmatprep.subr.mxu0 0.0
        %804 = vmatpush1.msra.mxu0 0.0
        %805 = vmatprep.subr.mxu0 0.0
        %806 = vmatpush1.msra.mxu0 0.0
        %807 = vmatprep.subr.mxu0 0.0
        %808 = vmatpush1.msra.mxu0 0.0
        %809 = vmatprep.subr.mxu0 0.0
        %810 = vmatpush1.msra.mxu0 0.0
        %811 = vmatprep.subr.mxu0 0.0
        %812 = vmatpush1.msra.mxu0 0.0
        %813 = vmatprep.subr.mxu0 0.0
        %814 = vmatpush1.msra.mxu0 0.0
        %815 = vmatprep.subr.mxu0 0.0
        %816 = vmatpush1.msra.mxu0 0.0
        %817 = vmatprep.subr.mxu0 0.0
        %818 = vmatpush1.msra.mxu0 0.0
        %819 = vmatprep.subr.mxu0 0.0
        %820 = vmatpush1.msra.mxu0 0.0
        %821 = vmatprep.subr.mxu0 0.0
        %822 = vmatpush1.msra.mxu0 0.0
        %823 = vmatprep.subr.mxu0 0.0
        %824 = vmatpush1.msra.mxu0 0.0
        %825 = vmatprep.subr.mxu0 0.0
        %826 = vmatpush1.msra.mxu0 0.0
        %827 = vmatprep.subr.mxu0 0.0
        %828 = vmatpush1.msra.mxu0 0.0
        %829 = vmatprep.subr.mxu0 0.0
        %830 = vmatpush1.msra.mxu0 0.0
        %831 = vmatprep.subr.mxu0 0.0
        %832 = vmatpush1.msra.mxu0 0.0
        %833 = vmatprep.subr.mxu0 0.0
        %834 = vmatpush1.msra.mxu0 0.0
        %835 = vmatprep.subr.mxu0 0.0
        %836 = vmatpush1.msra.mxu0 0.0
        %837 = vmatprep.subr.mxu0 0.0
        %838 = vmatpush1.msra.mxu0 0.0
        %839 = vmatprep.subr.mxu0 0.0
        %840 = vmatpush1.msra.mxu0 0.0
        %841 = vmatprep.subr.mxu0 0.0
        %842 = vmatpush1.msra.mxu0 0.0
        %843 = vmatprep.mubr.f32.mxu0 0.0
        %844 = vmatmul.mubr.f32.gmra.mrb[0].mxu0 %v777
        %v845 = vpop.f32.mrb[0].mxu0
        %v846 = vadd.f32 %v774, %v845
        %v847 = vpop.f32.mrb[0].mxu0
        %848 = vdwg.mxu0
        %vm849 = vcmask 64512
        %v851 = vsel %vm849, %v678, 0
        %v854 = vsel %vm849, %v762, 0
        %856 = vmatprep.subr.mxu0 0.0
        %857 = vmatpush1.xpose.msra.mxu0 %v854
        %858 = vmatprep.subr.mxu0 0.0
        %859 = vmatpush1.xpose.msra.mxu0 0.0
        %860 = vmatprep.subr.mxu0 0.0
        %861 = vmatpush1.xpose.msra.mxu0 0.0
        %862 = vmatprep.subr.mxu0 0.0
        %863 = vmatpush1.xpose.msra.mxu0 0.0
        %864 = vmatprep.subr.mxu0 0.0
        %865 = vmatpush1.xpose.msra.mxu0 0.0
        %866 = vmatprep.subr.mxu0 0.0
        %867 = vmatpush1.xpose.msra.mxu0 0.0
        %868 = vmatprep.subr.mxu0 0.0
        %869 = vmatpush1.xpose.msra.mxu0 0.0
        %870 = vmatprep.subr.mxu0 0.0
        %871 = vmatpush1.xpose.msra.mxu0 0.0
        %872 = vmatprep.subr.mxu0 0.0
        %873 = vmatpush1.xpose.msra.mxu0 0.0
        %874 = vmatprep.subr.mxu0 0.0
        %875 = vmatpush1.xpose.msra.mxu0 0.0
        %876 = vmatprep.subr.mxu0 0.0
        %877 = vmatpush1.xpose.msra.mxu0 0.0
        %878 = vmatprep.subr.mxu0 0.0
        %879 = vmatpush1.xpose.msra.mxu0 0.0
        %880 = vmatprep.subr.mxu0 0.0
        %881 = vmatpush1.xpose.msra.mxu0 0.0
        %882 = vmatprep.subr.mxu0 0.0
        %883 = vmatpush1.xpose.msra.mxu0 0.0
        %884 = vmatprep.subr.mxu0 0.0
        %885 = vmatpush1.xpose.msra.mxu0 0.0
        %886 = vmatprep.subr.mxu0 0.0
        %887 = vmatpush1.xpose.msra.mxu0 0.0
        %888 = vmatprep.subr.mxu0 0.0
        %889 = vmatpush1.xpose.msra.mxu0 0.0
        %890 = vmatprep.subr.mxu0 0.0
        %891 = vmatpush1.xpose.msra.mxu0 0.0
        %892 = vmatprep.subr.mxu0 0.0
        %893 = vmatpush1.xpose.msra.mxu0 0.0
        %894 = vmatprep.subr.mxu0 0.0
        %895 = vmatpush1.xpose.msra.mxu0 0.0
        %896 = vmatprep.subr.mxu0 0.0
        %897 = vmatpush1.xpose.msra.mxu0 0.0
        %898 = vmatprep.subr.mxu0 0.0
        %899 = vmatpush1.xpose.msra.mxu0 0.0
        %900 = vmatprep.subr.mxu0 0.0
        %901 = vmatpush1.xpose.msra.mxu0 0.0
        %902 = vmatprep.subr.mxu0 0.0
        %903 = vmatpush1.xpose.msra.mxu0 0.0
        %904 = vmatprep.subr.mxu0 0.0
        %905 = vmatpush1.xpose.msra.mxu0 0.0
        %906 = vmatprep.subr.mxu0 0.0
        %907 = vmatpush1.xpose.msra.mxu0 0.0
        %908 = vmatprep.subr.mxu0 0.0
        %909 = vmatpush1.xpose.msra.mxu0 0.0
        %910 = vmatprep.subr.mxu0 0.0
        %911 = vmatpush1.xpose.msra.mxu0 0.0
        %912 = vmatprep.subr.mxu0 0.0
        %913 = vmatpush1.xpose.msra.mxu0 0.0
        %914 = vmatprep.subr.mxu0 0.0
        %915 = vmatpush1.xpose.msra.mxu0 0.0
        %916 = vmatprep.subr.mxu0 0.0
        %917 = vmatpush1.xpose.msra.mxu0 0.0
        %918 = vmatprep.subr.mxu0 0.0
        %919 = vmatpush1.xpose.msra.mxu0 0.0
        %920 = vmatprep.mubr.f32.mxu0 0.0
        %921 = vmatmul.mubr.f32.gmra.mrb[0].mxu0 %v851
        %v922 = vpop.f32.mrb[0].mxu0
        %v923 = vadd.f32 0.0, %v922
        %v924 = vpop.f32.mrb[0].mxu0
        %925 = vdwg.mxu0
        %v926 = vsel %vm849, %v923, -inf
        %927 = vmax.xlane.f32.xlu0 %v926
        %v928 = vpop.xlane.xlu0 %927
        %v929 = vsub.f32 %v923, %v928
        %v930 = vmul.f32 %v929, 1.442695
        %v931 = vpow.pop %v930
        %v932 = vsel %vm849, %v931, 0.0
        %933 = vadd.xlane.f32.xlu0 %v932
        %v934 = vpop.xlane.xlu0 %933
        %v935 = vrcp.pop %v934
        %v936 = vmul.f32 %v934, %v935
        %v937 = vsub.f32 2.0, %v936
        %v938 = vmul.f32 %v935, %v937
        %v939 = vmul.f32 %v934, %v938
        %v940 = vsub.f32 2.0, %v939
        %v941 = vmul.f32 %v938, %v940
        %v942 = vmul.f32 %v931, %v941
        %v943 = vld [vmem:[#allocation3] sm:$0xff]
        %v944 = vadd.f32 %v943, %v942
        %945 = vst.msk [vmem:[#allocation3] sm:$0xff] %vm849, %v944
        %v947 = vsel %vm849, %v942, 0
        %949 = vmatprep.subr.mxu0 0.0
        %950 = vmatpush1.msra.mxu0 %v846
        %951 = vmatprep.subr.mxu0 0.0
        %952 = vmatpush1.msra.mxu0 0.0
        %953 = vmatprep.subr.mxu0 0.0
        %954 = vmatpush1.msra.mxu0 0.0
        %955 = vmatprep.subr.mxu0 0.0
        %956 = vmatpush1.msra.mxu0 0.0
        %957 = vmatprep.subr.mxu0 0.0
        %958 = vmatpush1.msra.mxu0 0.0
        %959 = vmatprep.subr.mxu0 0.0
        %960 = vmatpush1.msra.mxu0 0.0
        %961 = vmatprep.subr.mxu0 0.0
        %962 = vmatpush1.msra.mxu0 0.0
        %963 = vmatprep.subr.mxu0 0.0
        %964 = vmatpush1.msra.mxu0 0.0
        %965 = vmatprep.subr.mxu0 0.0
        %966 = vmatpush1.msra.mxu0 0.0
        %967 = vmatprep.subr.mxu0 0.0
        %968 = vmatpush1.msra.mxu0 0.0
        %969 = vmatprep.subr.mxu0 0.0
        %970 = vmatpush1.msra.mxu0 0.0
        %971 = vmatprep.subr.mxu0 0.0
        %972 = vmatpush1.msra.mxu0 0.0
        %973 = vmatprep.subr.mxu0 0.0
        %974 = vmatpush1.msra.mxu0 0.0
        %975 = vmatprep.subr.mxu0 0.0
        %976 = vmatpush1.msra.mxu0 0.0
        %977 = vmatprep.subr.mxu0 0.0
        %978 = vmatpush1.msra.mxu0 0.0
        %979 = vmatprep.subr.mxu0 0.0
        %980 = vmatpush1.msra.mxu0 0.0
        %981 = vmatprep.subr.mxu0 0.0
        %982 = vmatpush1.msra.mxu0 0.0
        %983 = vmatprep.subr.mxu0 0.0
        %984 = vmatpush1.msra.mxu0 0.0
        %985 = vmatprep.subr.mxu0 0.0
        %986 = vmatpush1.msra.mxu0 0.0
        %987 = vmatprep.subr.mxu0 0.0
        %988 = vmatpush1.msra.mxu0 0.0
        %989 = vmatprep.subr.mxu0 0.0
        %990 = vmatpush1.msra.mxu0 0.0
        %991 = vmatprep.subr.mxu0 0.0
        %992 = vmatpush1.msra.mxu0 0.0
        %993 = vmatprep.subr.mxu0 0.0
        %994 = vmatpush1.msra.mxu0 0.0
        %995 = vmatprep.subr.mxu0 0.0
        %996 = vmatpush1.msra.mxu0 0.0
        %997 = vmatprep.subr.mxu0 0.0
        %998 = vmatpush1.msra.mxu0 0.0
        %999 = vmatprep.subr.mxu0 0.0
        %1000 = vmatpush1.msra.mxu0 0.0
        %1001 = vmatprep.subr.mxu0 0.0
        %1002 = vmatpush1.msra.mxu0 0.0
        %1003 = vmatprep.subr.mxu0 0.0
        %1004 = vmatpush1.msra.mxu0 0.0
        %1005 = vmatprep.subr.mxu0 0.0
        %1006 = vmatpush1.msra.mxu0 0.0
        %1007 = vmatprep.subr.mxu0 0.0
        %1008 = vmatpush1.msra.mxu0 0.0
        %1009 = vmatprep.subr.mxu0 0.0
        %1010 = vmatpush1.msra.mxu0 0.0
        %1011 = vmatprep.subr.mxu0 0.0
        %1012 = vmatpush1.msra.mxu0 0.0
        %1013 = vmatprep.mubr.f32.mxu0 0.0
        %1014 = vmatmul.mubr.f32.gmra.mrb[0].mxu0 %v947
        %v1015 = vpop.f32.mrb[0].mxu0
        %v1016 = vadd.f32 0.0, %v1015
        %v1017 = vpop.f32.mrb[0].mxu0
        %1018 = vdwg.mxu0
        %v1019 = vld [vmem:[#allocation2] sm:$0xff]
        %v1020 = vld [vmem:[%s584] sm:$0xff]
        %v1022 = vsel %vm849, %v1016, 0
        %1024 = vmatprep.subr.mxu0 0.0
        %1025 = vmatpush1.msra.mxu0 %v1020
        %1026 = vmatprep.subr.mxu0 0.0
        %1027 = vmatpush1.msra.mxu0 0.0
        %1028 = vmatprep.subr.mxu0 0.0
        %1029 = vmatpush1.msra.mxu0 0.0
        %1030 = vmatprep.subr.mxu0 0.0
        %1031 = vmatpush1.msra.mxu0 0.0
        %1032 = vmatprep.subr.mxu0 0.0
        %1033 = vmatpush1.msra.mxu0 0.0
        %1034 = vmatprep.subr.mxu0 0.0
        %1035 = vmatpush1.msra.mxu0 0.0
        %1036 = vmatprep.subr.mxu0 0.0
        %1037 = vmatpush1.msra.mxu0 0.0
        %1038 = vmatprep.subr.mxu0 0.0
        %1039 = vmatpush1.msra.mxu0 0.0
        %1040 = vmatprep.subr.mxu0 0.0
        %1041 = vmatpush1.msra.mxu0 0.0
        %1042 = vmatprep.subr.mxu0 0.0
        %1043 = vmatpush1.msra.mxu0 0.0
        %1044 = vmatprep.subr.mxu0 0.0
        %1045 = vmatpush1.msra.mxu0 0.0
        %1046 = vmatprep.subr.mxu0 0.0
        %1047 = vmatpush1.msra.mxu0 0.0
        %1048 = vmatprep.subr.mxu0 0.0
        %1049 = vmatpush1.msra.mxu0 0.0
        %1050 = vmatprep.subr.mxu0 0.0
        %1051 = vmatpush1.msra.mxu0 0.0
        %1052 = vmatprep.subr.mxu0 0.0
        %1053 = vmatpush1.msra.mxu0 0.0
        %1054 = vmatprep.subr.mxu0 0.0
        %1055 = vmatpush1.msra.mxu0 0.0
        %1056 = vmatprep.subr.mxu0 0.0
        %1057 = vmatpush1.msra.mxu0 0.0
        %1058 = vmatprep.subr.mxu0 0.0
        %1059 = vmatpush1.msra.mxu0 0.0
        %1060 = vmatprep.subr.mxu0 0.0
        %1061 = vmatpush1.msra.mxu0 0.0
        %1062 = vmatprep.subr.mxu0 0.0
        %1063 = vmatpush1.msra.mxu0 0.0
        %1064 = vmatprep.subr.mxu0 0.0
        %1065 = vmatpush1.msra.mxu0 0.0
        %1066 = vmatprep.subr.mxu0 0.0
        %1067 = vmatpush1.msra.mxu0 0.0
        %1068 = vmatprep.subr.mxu0 0.0
        %1069 = vmatpush1.msra.mxu0 0.0
        %1070 = vmatprep.subr.mxu0 0.0
        %1071 = vmatpush1.msra.mxu0 0.0
        %1072 = vmatprep.subr.mxu0 0.0
        %1073 = vmatpush1.msra.mxu0 0.0
        %1074 = vmatprep.subr.mxu0 0.0
        %1075 = vmatpush1.msra.mxu0 0.0
        %1076 = vmatprep.subr.mxu0 0.0
        %1077 = vmatpush1.msra.mxu0 0.0
        %1078 = vmatprep.subr.mxu0 0.0
        %1079 = vmatpush1.msra.mxu0 0.0
        %1080 = vmatprep.subr.mxu0 0.0
        %1081 = vmatpush1.msra.mxu0 0.0
        %1082 = vmatprep.subr.mxu0 0.0
        %1083 = vmatpush1.msra.mxu0 0.0
        %1084 = vmatprep.subr.mxu0 0.0
        %1085 = vmatpush1.msra.mxu0 0.0
        %1086 = vmatprep.subr.mxu0 0.0
        %1087 = vmatpush1.msra.mxu0 0.0
        %1088 = vmatprep.mubr.f32.mxu0 0.0
        %1089 = vmatmul.mubr.f32.gmra.mrb[0].mxu0 %v1022
        %v1090 = vpop.f32.mrb[0].mxu0
        %v1091 = vadd.f32 0.0, %v1090
        %v1092 = vpop.f32.mrb[0].mxu0
        %1093 = vdwg.mxu0
        %v1094 = vadd.f32 %v1019, %v1091
        %1095 = vst.msk [vmem:[#allocation2] sm:$0xff] %vm607, %v1094
        %p1096 = scmp.eq.s32.totalorder %s35, 1
        // Predicated region
        $region69: #{tpu_custom_call.1} parent=63 // pred_check
          %p1097 = pneg %p1096
        $region70: #{tpu_custom_call.1} parent=63 // pred_check_branch
          %1099 = sbr.rel (%p1097) target = $region72
        $region71: #{tpu_custom_call.1} parent=63 // pred_region
          %v1100 = vld [vmem:[#allocation2] sm:$0xff]
          %v1101 = vld [vmem:[%s10] sm:$0x1]
          %v1103 = vlaneseq
          %v1104 = vshrl.u32 %v1103, 7
          %v1105 = vsub.s32 0, %v1104
          %v1106 = vrot.slane %v1101, %v1105
          %v1108 = vadd.f32 %v1100, %v1106
          %1109 = vst.msk [vmem:[%s537] sm:$0xff] %vm607, %v1108
          %v1110 = vld [vmem:[#allocation3] sm:$0xff]
          %v1111 = vmul.f32 %v1110, 0.5
          %1112 = vst.msk [vmem:[%s544] sm:$0xff] %vm849, %v1111
        $region72: #{tpu_custom_call.1} parent=63 // pred_fallthru
          _
        %s1113 = sand.u32 %s331, 1
        %s1114 = scalar_lea.sflag [#allocation5], %s1113
        %s1115 = sand.u32 %s331, 1
        %s1116 = smul.addr %s1115, 8
        %s1117 = scalar_lea.vmem [#allocation4], %s1116
        %s1118 = sand.u32 %s357, 1
        %s1119 = scalar_lea.sflag [#allocation7], %s1118
        %s1120 = sand.u32 %s357, 1
        %s1121 = smul.addr %s1120, 8
        %s1122 = scalar_lea.vmem [#allocation6], %s1121
        // Predicated region
        $region73: #{tpu_custom_call.1} parent=63 // pred_check
          %p1123 = pneg %p341
        $region74: #{tpu_custom_call.1} parent=63 // pred_check_branch
          %1125 = sbr.rel (%p1123) target = $region76
        $region75: #{tpu_custom_call.1} parent=63 // pred_region
          %s1127 = ssub.s32 128, 128
          %1128 = vsyncadd %s1114, %s1127
          %s1129 = smul.addr %s34, 128
          %s1130 = scalar_lea.hbm %s11, %s1129
          %s1132 = sshll.u32 %s1117, 4
          %s1133 = int_to_ptr.vmem [resolvable:$true] %s1132
          %1135 = dma.vmem_to_hbm [thread:$0]  %s1133, 128, %s1130, %s1114
        $region76: #{tpu_custom_call.1} parent=63 // pred_fallthru
          _
        // Predicated region
        $region77: #{tpu_custom_call.1} parent=63 // pred_check
          %p1136 = pneg %p367
        $region78: #{tpu_custom_call.1} parent=63 // pred_check_branch
          %1138 = sbr.rel (%p1136) target = $region80
        $region79: #{tpu_custom_call.1} parent=63 // pred_region
          %s1140 = ssub.s32 128, 128
          %1141 = vsyncadd %s1119, %s1140
          %s1142 = smul.addr %s34, 128
          %s1143 = scalar_lea.hbm %s12, %s1142
          %s1145 = sshll.u32 %s1122, 4
          %s1146 = int_to_ptr.vmem [resolvable:$true] %s1145
          %1148 = dma.vmem_to_hbm [thread:$0]  %s1146, 128, %s1143, %s1119
        $region80: #{tpu_custom_call.1} parent=63 // pred_fallthru
          _
      $region64: #{tpu_custom_call.1} parent=5 // pred_fallthru
        _
      %p1149 = scmp.le.s32.totalorder 2, %s25
      // Predicated region
      $region81: #{tpu_custom_call.1} parent=5 // pred_check
        %p1150 = pneg %p1149
      $region82: #{tpu_custom_call.1} parent=5 // pred_check_branch
        %1152 = sbr.rel (%p1150) target = $region84
      $region83: #{tpu_custom_call.1} parent=5 // pred_region
        %s1153 = ssub.s32 %s25, 2
        // Predicated region
        $region85: #{tpu_custom_call.1} parent=83 // pred_check
          %p1154 = pneg %p347
        $region86: #{tpu_custom_call.1} parent=83 // pred_check_branch
          %1156 = sbr.rel (%p1154) target = $region88
        $region87: #{tpu_custom_call.1} parent=83 // pred_region
          %s1157 = sand.u32 %s332, 1
          %s1158 = scalar_lea.sflag [#allocation5], %s1157
          %s1159 = sand.u32 %s332, 1
          %s1160 = smul.addr %s1159, 8
          %s1161 = scalar_lea.vmem [#allocation4], %s1160
          %1162 = dma.done %s1158, 128
        $region88: #{tpu_custom_call.1} parent=83 // pred_fallthru
          _
        // Predicated region
        $region89: #{tpu_custom_call.1} parent=83 // pred_check
          %p1163 = pneg %p373
        $region90: #{tpu_custom_call.1} parent=83 // pred_check_branch
          %1165 = sbr.rel (%p1163) target = $region92
        $region91: #{tpu_custom_call.1} parent=83 // pred_region
          %s1166 = sand.u32 %s358, 1
          %s1167 = scalar_lea.sflag [#allocation7], %s1166
          %s1168 = sand.u32 %s358, 1
          %s1169 = smul.addr %s1168, 8
          %s1170 = scalar_lea.vmem [#allocation6], %s1169
          %1171 = dma.done %s1167, 128
        $region92: #{tpu_custom_call.1} parent=83 // pred_fallthru
          _
      $region84: #{tpu_custom_call.1} parent=5 // pred_fallthru
        _
    $region6: #{tpu_custom_call.1} parent=1 // loop_footer
      %s29 = sadd.s32 1, %s25
    $region7: #{tpu_custom_call.1} parent=1 // loop_footer_branch
      %24 = sbr.rel target = $region3
    $region8: #{tpu_custom_call.1} parent=1 // loop_exit
      _
    %1172 = vsyncpa [#allocation5], 1
    %s1173 = scalar_lea.sflag [#allocation5], 1
    %1174 = vsyncpa %s1173, 1
    %1175 = vsyncpa [#allocation7], 1
    %s1176 = scalar_lea.sflag [#allocation7], 1
    %1177 = vsyncpa %s1176, 1

</llo_original>
